<compile_context>
chip_gen: v6e
topology: v6e:2x2x1
jax: 0.10.0
libtpu: 0.0.40
codegen_flags: <defaults>
</compile_context>

<pallas_src>
import functools
import math

import jax
import jax.numpy as jnp
from jax.experimental import pallas as pl
from jax.experimental.pallas import tpu as pltpu

WEIGHT_DTYPE = jnp.bfloat16   # matmul weights; accumulation stays f32


# ----------------------------- in-kernel helpers -----------------------------

def _layernorm(x, g, b, eps=1e-5):
    mu = jnp.mean(x, axis=-1, keepdims=True)
    var = jnp.mean((x - mu) ** 2, axis=-1, keepdims=True)
    return (x - mu) * jax.lax.rsqrt(var + eps) * g + b


def _gelu_exact(x):
    # matches torch.nn.GELU() (erf formulation)
    return 0.5 * x * (1.0 + jax.lax.erf(x * (1.0 / math.sqrt(2.0))))


# ------------------------------- Pallas kernels -------------------------------

def stacked_blocks_kernel(x_ref, maskadd_ref, eg_ref, eb_ref,
                          wqkv_ref, bqkv_ref, wp_ref, bpj_ref,
                          w1_ref, b1_ref, w2_ref, b2_ref,
                          ln1g_ref, ln1b_ref, ln2g_ref, ln2b_ref,
                          y_ref, attw_ref, mlpa_ref,
                          h_scr, *, num_heads):
    """One grid step = one transformer block applied to one batch element.

    grid = (B, n_blocks); h is carried across the (inner, "arbitrary") block
    axis in the VMEM scratch `h_scr`, so HBM only sees the embeddings in and
    the final hidden state out (plus the returned attention/MLP activations).
    """
    l = pl.program_id(1)                       # block index (inner grid axis)

    @pl.when(l == 0)
    def _():
        # fused embedding LayerNorm, applied once per batch element
        h_scr[...] = _layernorm(x_ref[0], eg_ref[...], eb_ref[...])

    x = h_scr[...]                             # (S, H) f32 carry
    S, H = x.shape
    D = H // num_heads
    scale = 1.0 / math.sqrt(D)
    mask_add = maskadd_ref[...]                # (S, S) additive mask (0 / -1e30)

    # --- fused QKV projection (single MXU pass, bf16 weights, f32 accumulate) ---
    wqkv = wqkv_ref[0]                         # (H, 3H)
    qkv = jnp.dot(x.astype(wqkv.dtype), wqkv,
                  preferred_element_type=jnp.float32) + bqkv_ref[0]   # (S, 3H)
    q = qkv[:, :H]
    k = qkv[:, H:2 * H]
    v = qkv[:, 2 * H:]

    # --- attention; the output projection is accumulated per head so the
    #     per-head outputs never need to be concatenated/relaid out ---
    # TODO(synk): for large num_heads, replace the unrolled loop with a
    # head-batched contraction or an extra grid axis over heads.
    att_out = jnp.zeros_like(x)                # (S, H) f32
    for hh in range(num_heads):
        cs = slice(hh * D, (hh + 1) * D)
        qh, kh, vh = q[:, cs], k[:, cs], v[:, cs]
        s = jnp.dot(qh, kh.T, preferred_element_type=jnp.float32) * scale + mask_add
        e = jnp.exp(s - jnp.max(s, axis=-1, keepdims=True))
        p = e * pl.reciprocal(jnp.sum(e, axis=-1, keepdims=True), approx=True)
        attw_ref[0, 0, hh] = p                               # normalized weights
        o_h = jnp.dot(p, vh, preferred_element_type=jnp.float32)        # (S, D)
        wp_h = wp_ref[0, hh]                                            # (D, H)
        att_out = att_out + jnp.dot(o_h.astype(wp_h.dtype), wp_h,
                                    preferred_element_type=jnp.float32)

    x1 = _layernorm(x + att_out + bpj_ref[0], ln1g_ref[0], ln1b_ref[0])

    # --- MLP ---
    w1 = w1_ref[0]
    h1 = _gelu_exact(jnp.dot(x1.astype(w1.dtype), w1,
                             preferred_element_type=jnp.float32) + b1_ref[0])
    mlpa_ref[0, 0] = h1
    w2 = w2_ref[0]
    x2 = x1 + jnp.dot(h1.astype(w2.dtype), w2,
                      preferred_element_type=jnp.float32) + b2_ref[0]

    out = _layernorm(x2, ln2g_ref[0], ln2b_ref[0])
    h_scr[...] = out                           # carry to next block
    y_ref[0] = out                             # resident output tile


def heads_kernel(h2_ref, h1_ref, wrs_ref, brs_ref, wa_ref, ba_ref, rs_ref, a_ref):
    """Fused prediction heads: [rtg | state] from h[:,2], action from h[:,1]."""
    wrs = wrs_ref[...]
    rs_ref[...] = jnp.dot(h2_ref[...].astype(wrs.dtype), wrs,
                          preferred_element_type=jnp.float32) + brs_ref[...]
    wa = wa_ref[...]
    a_ref[...] = jnp.dot(h1_ref[...].astype(wa.dtype), wa,
                         preferred_element_type=jnp.float32) + ba_ref[...]


# ------------------------------- pallas wrappers -------------------------------

def run_stacked_blocks(h, params, num_heads):
    """Run the whole block stack in a single pallas_call."""
    B, S, H = h.shape
    F4 = 4 * H
    L = params["wqkv"].shape[0]
    N = num_heads

    def const_spec(shape):
        return pl.BlockSpec(shape, lambda b, l: (0,) * len(shape))

    def blk_spec(full_shape):
        nd = len(full_shape)
        return pl.BlockSpec((1,) + tuple(full_shape[1:]),
                            lambda b, l: (l,) + (0,) * (nd - 1))

    in_specs = [
        pl.BlockSpec((1, S, H), lambda b, l: (b, 0, 0)),     # embeddings
        const_spec((S, S)),                                  # additive mask
        const_spec((1, H)), const_spec((1, H)),              # embed LN g/b
        blk_spec(params["wqkv"].shape), blk_spec(params["bqkv"].shape),
        blk_spec(params["wp"].shape), blk_spec(params["bp"].shape),
        blk_spec(params["w1"].shape), blk_spec(params["b1"].shape),
        blk_spec(params["w2"].shape), blk_spec(params["b2"].shape),
        blk_spec(params["ln1_g"].shape), blk_spec(params["ln1_b"].shape),
        blk_spec(params["ln2_g"].shape), blk_spec(params["ln2_b"].shape),
    ]
    out_specs = [
        pl.BlockSpec((1, S, H), lambda b, l: (b, 0, 0)),          # h (resident over l)
        pl.BlockSpec((1, 1, N, S, S), lambda b, l: (l, b, 0, 0, 0)),
        pl.BlockSpec((1, 1, S, F4), lambda b, l: (l, b, 0, 0)),
    ]
    out_shape = (
        jax.ShapeDtypeStruct((B, S, H), jnp.float32),
        jax.ShapeDtypeStruct((L, B, N, S, S), jnp.float32),
        jax.ShapeDtypeStruct((L, B, S, F4), jnp.float32),
    )
    # TODO(synk): for large H on v7x (64 MiB VMEM), single-buffer the constant
    # weight specs and K-tile the MLP matmuls instead of holding w1/w2 resident.
    y, attw, mlpa = pl.pallas_call(
        functools.partial(stacked_blocks_kernel, num_heads=num_heads),
        grid=(B, L),
        in_specs=in_specs,
        out_specs=out_specs,
        out_shape=out_shape,
        scratch_shapes=[pltpu.VMEM((S, H), jnp.float32)],     # h carry across blocks
        compiler_params=pltpu.CompilerParams(
            dimension_semantics=("parallel", "arbitrary"),
            vmem_limit_bytes=64 * 1024 * 1024),
    )(h, params["mask_add"], params["embed_ln_g"], params["embed_ln_b"],
      params["wqkv"], params["bqkv"], params["wp"], params["bp"],
      params["w1"], params["b1"], params["w2"], params["b2"],
      params["ln1_g"], params["ln1_b"], params["ln2_g"], params["ln2_b"])
    return y, attw, mlpa


def run_heads(h2_flat, h1_flat, params):
    BT, _ = h2_flat.shape
    o_rs = params["w_rs"].shape[1]
    o_a = params["w_a"].shape[1]
    return pl.pallas_call(
        heads_kernel,
        out_shape=(jax.ShapeDtypeStruct((BT, o_rs), jnp.float32),
                   jax.ShapeDtypeStruct((BT, o_a), jnp.float32)),
    )(h2_flat, h1_flat, params["w_rs"], params["b_rs"], params["w_a"], params["b_a"])


# ------------------------------ model construction ------------------------------

def block_causal_mask(max_T):
    """kron(eye(max_T//3), ones(3,3)) OR tril — same as the PyTorch buffer."""
    blocks = jnp.kron(jnp.eye(max_T // 3), jnp.ones((3, 3)))
    tril = jnp.tril(jnp.ones((max_T, max_T)))
    return jnp.logical_or(blocks > 0, tril > 0)


def init_params(key, *, state_dim, act_dim, n_blocks, h_dim, context_len,
                n_heads, max_timestep):
    state_dim_p1 = state_dim + 1
    act_dim_p1 = act_dim + 1
    S = 3 * context_len
    H = h_dim
    L = n_blocks
    D = H // n_heads

    def nxt():
        nonlocal key
        key, sub = jax.random.split(key)
        return sub

    def normal(shape, dtype=jnp.float32, scale=0.02):
        return (scale * jax.random.normal(nxt(), shape)).astype(dtype)

    mask = block_causal_mask(S)
    mask_add = jnp.where(mask, 0.0, -1e30).astype(jnp.float32)

    params = {
        "embed_timestep": normal((max_timestep, H)),
        "embed_state": normal((state_dim_p1, H)),
        "embed_action": normal((act_dim_p1, H)),
        "embed_rtg_w": normal((1, H)),
        "embed_rtg_b": normal((1, H)),
        "embed_ln_g": jnp.ones((1, H), jnp.float32),
        "embed_ln_b": jnp.zeros((1, H), jnp.float32),
        # fused prediction heads: rtg (1 col) and state (state_dim+1 cols) share h[:,2]
        "w_rs": normal((H, 1 + state_dim_p1), WEIGHT_DTYPE),
        "b_rs": normal((1, 1 + state_dim_p1)),
        "w_a": normal((H, act_dim_p1), WEIGHT_DTYPE),
        "b_a": normal((1, act_dim_p1)),
        "mask_add": mask_add,
        # stacked transformer-block params (leading dim = block index)
        "wqkv": normal((L, H, 3 * H), WEIGHT_DTYPE),          # fused q|k|v
        "bqkv": normal((L, 1, 3 * H)),
        "wp": normal((L, n_heads, D, H), WEIGHT_DTYPE),       # proj, split per head
        "bp": normal((L, 1, H)),
        "w1": normal((L, H, 4 * H), WEIGHT_DTYPE),
        "b1": normal((L, 1, 4 * H)),
        "w2": normal((L, 4 * H, H), WEIGHT_DTYPE),
        "b2": normal((L, 1, H)),
        "ln1_g": jnp.ones((L, 1, H), jnp.float32),
        "ln1_b": jnp.zeros((L, 1, H), jnp.float32),
        "ln2_g": jnp.ones((L, 1, H), jnp.float32),
        "ln2_b": jnp.zeros((L, 1, H), jnp.float32),
    }
    return params


def decision_transformer_forward(params, timesteps, states, actions, returns_to_go,
                                 *, num_heads):
    """Mirrors DecisionTransformer.forward (discrete states/actions, eval mode)."""
    B, T = states.shape
    H = params["embed_ln_g"].shape[-1]
    L = params["wqkv"].shape[0]
    state_dim_p1 = params["w_rs"].shape[1] - 1
    act_dim_p1 = params["w_a"].shape[1]

    # --- embeddings (glue: gathers + tiny Linear(1, H)) ---
    time_emb = jnp.take(params["embed_timestep"], timesteps, axis=0)           # (B,T,H)
    state_emb = jnp.take(params["embed_state"], states, axis=0) + time_emb     # (B,T,H)
    action_emb = jnp.take(params["embed_action"], actions, axis=0) + time_emb  # (B,T,H)
    rtg_emb = returns_to_go @ params["embed_rtg_w"] + params["embed_rtg_b"] + time_emb
    # state_mask_value / action_mask_value default to None -> no masking branch

    # interleave (rtg, state, action) per timestep -> (B, 3T, H)
    h = jnp.stack([rtg_emb, state_emb, action_emb], axis=1)        # (B,3,T,H)
    h = jnp.transpose(h, (0, 2, 1, 3)).reshape(B, 3 * T, H)

    # --- Pallas hot path: embed LN + all blocks in one fused kernel ---
    y, attw, mlpa = run_stacked_blocks(h, params, num_heads)
    all_weights = [attw[i] for i in range(L)]
    all_mlp_activations = [mlpa[i] for i in range(L)]

    # same (quirky) reshape as the reference: (B, 3T, H) -> (B, 3, T, H)
    h4 = y.reshape(B, 3, T, H)
    h2_flat = h4[:, 2].reshape(B * T, H)
    h1_flat = h4[:, 1].reshape(B * T, H)
    rs, a = run_heads(h2_flat, h1_flat, params)
    rtg_preds = rs[:, :1].reshape(B, T, 1)
    state_preds = rs[:, 1:].reshape(B, T, state_dim_p1)
    action_preds = a.reshape(B, T, act_dim_p1)
    # discrete_actions=True -> no Tanh on action head
    return state_preds, action_preds, rtg_preds, all_weights, all_mlp_activations


# ------------------------------------ main ------------------------------------

if __name__ == "__main__":
    # small config
    state_dim, act_dim = 6, 4
    n_blocks, h_dim, context_len, n_heads = 2, 32, 8, 2
    max_timestep = 64
    B, T = 2, context_len

    key = jax.random.PRNGKey(0)
    key, kp, kt, ks, ka, kr = jax.random.split(key, 6)

    params = init_params(kp, state_dim=state_dim, act_dim=act_dim,
                         n_blocks=n_blocks, h_dim=h_dim, context_len=context_len,
                         n_heads=n_heads, max_timestep=max_timestep)

    timesteps = jax.random.randint(kt, (B, T), 0, max_timestep, dtype=jnp.int32)
    states = jax.random.randint(ks, (B, T), 0, state_dim + 1, dtype=jnp.int32)
    actions = jax.random.randint(ka, (B, T), 0, act_dim + 1, dtype=jnp.int32)
    returns_to_go = jax.random.normal(kr, (B, T, 1), dtype=jnp.float32)

    fwd = jax.jit(functools.partial(decision_transformer_forward, num_heads=n_heads))
    outs = fwd(params, timesteps, states, actions, returns_to_go)
    state_preds, action_preds, rtg_preds, all_weights, all_mlp_activations = outs
    jax.block_until_ready((state_preds, action_preds, rtg_preds,
                           all_weights, all_mlp_activations))

    assert state_preds.shape == (B, T, state_dim + 1)
    assert action_preds.shape == (B, T, act_dim + 1)
    assert rtg_preds.shape == (B, T, 1)
    assert len(all_weights) == n_blocks and all_weights[0].shape == (B, n_heads, 3 * T, 3 * T)
    assert len(all_mlp_activations) == n_blocks and all_mlp_activations[0].shape == (B, 3 * T, 4 * h_dim)
    assert bool(jnp.all(jnp.isfinite(state_preds)))
    print("KERNEL_OK")
</pallas_src>

<mosaic_0001>
module attributes {stable_mosaic.version = 11 : i64} {
  func.func @heads_kernel(%arg0: memref<16x32xf32, #tpu.memory_space<vmem>>, %arg1: memref<16x32xf32, #tpu.memory_space<vmem>>, %arg2: memref<32x8xbf16, #tpu.memory_space<vmem>>, %arg3: memref<1x8xf32, #tpu.memory_space<vmem>>, %arg4: memref<32x5xbf16, #tpu.memory_space<vmem>>, %arg5: memref<1x5xf32, #tpu.memory_space<vmem>>, %arg6: memref<16x8xf32, #tpu.memory_space<vmem>>, %arg7: memref<16x5xf32, #tpu.memory_space<vmem>>) attributes {dimension_semantics = [], scalar_prefetch = 0 : i64, scratch_operands = 0 : i64, tpu.core_type = #tpu.core_type<tc>} {
    %c0 = arith.constant 0 : index
    %c0_0 = arith.constant 0 : index
    %0 = vector.load %arg2[%c0, %c0_0] : memref<32x8xbf16, #tpu.memory_space<vmem>>, vector<32x8xbf16>
    %c0_1 = arith.constant 0 : index
    %c0_2 = arith.constant 0 : index
    %1 = vector.load %arg0[%c0_1, %c0_2] : memref<16x32xf32, #tpu.memory_space<vmem>>, vector<16x32xf32>
    %2 = arith.truncf %1 : vector<16x32xf32> to vector<16x32xbf16>
    %cst = arith.constant dense<0.000000e+00> : vector<16x8xf32>
    %3 = tpu.matmul %2, %0, %cst {dimension_numbers = #tpu.dot_dimension_numbers<[1], [0], [0], [1], [0, 0, 1, 1], [], []>} : vector<16x32xbf16>, vector<32x8xbf16>, vector<16x8xf32> -> vector<16x8xf32>
    %c0_3 = arith.constant 0 : index
    %c0_4 = arith.constant 0 : index
    %4 = vector.load %arg3[%c0_3, %c0_4] : memref<1x8xf32, #tpu.memory_space<vmem>>, vector<1x8xf32>
    %5 = vector.broadcast %4 : vector<1x8xf32> to vector<16x8xf32>
    %6 = arith.addf %3, %5 : vector<16x8xf32>
    %c0_5 = arith.constant 0 : index
    %c0_6 = arith.constant 0 : index
    %7 = vector.load %arg6[%c0_5, %c0_6] : memref<16x8xf32, #tpu.memory_space<vmem>>, vector<16x8xf32>
    tpu.vector_store %arg6[%c0_5, %c0_6], %6 {strides = array<i32>} : memref<16x8xf32, #tpu.memory_space<vmem>>, vector<16x8xf32>,
    %c0_7 = arith.constant 0 : index
    %c0_8 = arith.constant 0 : index
    %8 = vector.load %arg4[%c0_7, %c0_8] : memref<32x5xbf16, #tpu.memory_space<vmem>>, vector<32x5xbf16>
    %c0_9 = arith.constant 0 : index
    %c0_10 = arith.constant 0 : index
    %9 = vector.load %arg1[%c0_9, %c0_10] : memref<16x32xf32, #tpu.memory_space<vmem>>, vector<16x32xf32>
    %10 = arith.truncf %9 : vector<16x32xf32> to vector<16x32xbf16>
    %cst_11 = arith.constant dense<0.000000e+00> : vector<16x5xf32>
    %11 = tpu.matmul %10, %8, %cst_11 {dimension_numbers = #tpu.dot_dimension_numbers<[1], [0], [0], [1], [0, 0, 1, 1], [], []>} : vector<16x32xbf16>, vector<32x5xbf16>, vector<16x5xf32> -> vector<16x5xf32>
    %c0_12 = arith.constant 0 : index
    %c0_13 = arith.constant 0 : index
    %12 = vector.load %arg5[%c0_12, %c0_13] : memref<1x5xf32, #tpu.memory_space<vmem>>, vector<1x5xf32>
    %13 = vector.broadcast %12 : vector<1x5xf32> to vector<16x5xf32>
    %14 = arith.addf %11, %13 : vector<16x5xf32>
    %c0_14 = arith.constant 0 : index
    %c0_15 = arith.constant 0 : index
    %15 = vector.load %arg7[%c0_14, %c0_15] : memref<16x5xf32, #tpu.memory_space<vmem>>, vector<16x5xf32>
    tpu.vector_store %arg7[%c0_14, %c0_15], %14 {strides = array<i32>} : memref<16x5xf32, #tpu.memory_space<vmem>>, vector<16x5xf32>,
    return
  }
}

module attributes {stable_mosaic.version = 11 : i64} {
  func.func @stacked_blocks_kernel(%arg0: i32, %arg1: i32, %arg2: memref<1x24x32xf32, #tpu.memory_space<vmem>>, %arg3: memref<24x24xf32, #tpu.memory_space<vmem>>, %arg4: memref<1x32xf32, #tpu.memory_space<vmem>>, %arg5: memref<1x32xf32, #tpu.memory_space<vmem>>, %arg6: memref<1x32x96xbf16, #tpu.memory_space<vmem>>, %arg7: memref<1x1x96xf32, #tpu.memory_space<vmem>>, %arg8: memref<1x2x16x32xbf16, #tpu.memory_space<vmem>>, %arg9: memref<1x1x32xf32, #tpu.memory_space<vmem>>, %arg10: memref<1x32x128xbf16, #tpu.memory_space<vmem>>, %arg11: memref<1x1x128xf32, #tpu.memory_space<vmem>>, %arg12: memref<1x128x32xbf16, #tpu.memory_space<vmem>>, %arg13: memref<1x1x32xf32, #tpu.memory_space<vmem>>, %arg14: memref<1x1x32xf32, #tpu.memory_space<vmem>>, %arg15: memref<1x1x32xf32, #tpu.memory_space<vmem>>, %arg16: memref<1x1x32xf32, #tpu.memory_space<vmem>>, %arg17: memref<1x1x32xf32, #tpu.memory_space<vmem>>, %arg18: memref<1x24x32xf32, #tpu.memory_space<vmem>>, %arg19: memref<1x1x2x24x24xf32, #tpu.memory_space<vmem>>, %arg20: memref<1x1x24x128xf32, #tpu.memory_space<vmem>>, %arg21: memref<24x32xf32, #tpu.memory_space<vmem>>) attributes {dimension_semantics = [#tpu.dimension_semantics<parallel>, #tpu.dimension_semantics<arbitrary>], iteration_bounds = array<i64: 2, 2>, scalar_prefetch = 0 : i64, scratch_operands = 1 : i64, tpu.core_type = #tpu.core_type<tc>, window_params = [{transform_indices = @transform_0, window_bounds = array<i64: 1, 24, 32>}, {pipeline_mode = #tpu.pipeline_mode<synchronous>, transform_indices = @transform_1, window_bounds = array<i64: 24, 24>}, {pipeline_mode = #tpu.pipeline_mode<synchronous>, transform_indices = @transform_2, window_bounds = array<i64: 1, 32>}, {pipeline_mode = #tpu.pipeline_mode<synchronous>, transform_indices = @transform_3, window_bounds = array<i64: 1, 32>}, {transform_indices = @transform_4, window_bounds = array<i64: 1, 32, 96>}, {transform_indices = @transform_5, window_bounds = array<i64: 1, 1, 96>}, {transform_indices = @transform_6, window_bounds = array<i64: 1, 2, 16, 32>}, {transform_indices = @transform_7, window_bounds = array<i64: 1, 1, 32>}, {transform_indices = @transform_8, window_bounds = array<i64: 1, 32, 128>}, {transform_indices = @transform_9, window_bounds = array<i64: 1, 1, 128>}, {transform_indices = @transform_10, window_bounds = array<i64: 1, 128, 32>}, {transform_indices = @transform_11, window_bounds = array<i64: 1, 1, 32>}, {transform_indices = @transform_12, window_bounds = array<i64: 1, 1, 32>}, {transform_indices = @transform_13, window_bounds = array<i64: 1, 1, 32>}, {transform_indices = @transform_14, window_bounds = array<i64: 1, 1, 32>}, {transform_indices = @transform_15, window_bounds = array<i64: 1, 1, 32>}, {transform_indices = @transform_16, window_bounds = array<i64: 1, 24, 32>}, {transform_indices = @transform_17, window_bounds = array<i64: 1, 1, 2, 24, 24>}, {transform_indices = @transform_18, window_bounds = array<i64: 1, 1, 24, 128>}]} {
    %c0_i32 = arith.constant 0 : i32
    %0 = arith.cmpi eq, %arg1, %c0_i32 : i32
    %1 = arith.extui %0 : i1 to i32
    %c0_i32_0 = arith.constant 0 : i32
    %2 = arith.cmpi ne, %1, %c0_i32_0 : i32
    scf.if %2 {
      %c0_91 = arith.constant 0 : index
      %c0_92 = arith.constant 0 : index
      %c0_93 = arith.constant 0 : index
      %160 = vector.load %arg2[%c0_91, %c0_92, %c0_93] : memref<1x24x32xf32, #tpu.memory_space<vmem>>, vector<1x24x32xf32>
      %161 = vector.shape_cast %160 : vector<1x24x32xf32> to vector<24x32xf32>
      %c0_94 = arith.constant 0 : index
      %c0_95 = arith.constant 0 : index
      %162 = vector.load %arg4[%c0_94, %c0_95] : memref<1x32xf32, #tpu.memory_space<vmem>>, vector<1x32xf32>
      %c0_96 = arith.constant 0 : index
      %c0_97 = arith.constant 0 : index
      %163 = vector.load %arg5[%c0_96, %c0_97] : memref<1x32xf32, #tpu.memory_space<vmem>>, vector<1x32xf32>
      %cst_98 = arith.constant dense<0.000000e+00> : vector<24xf32>
      %164 = vector.multi_reduction <add>, %161, %cst_98 [1] : vector<24x32xf32> to vector<24xf32>
      %165 = vector.shape_cast %164 : vector<24xf32> to vector<24x1xf32>
      %cst_99 = arith.constant 3.200000e+01 : f32
      %166 = vector.broadcast %cst_99 : f32 to vector<24x1xf32>
      %167 = arith.divf %165, %166 : vector<24x1xf32>
      %168 = vector.broadcast %167 : vector<24x1xf32> to vector<24x32xf32>
      %169 = arith.subf %161, %168 : vector<24x32xf32>
      %170 = arith.mulf %169, %169 : vector<24x32xf32>
      %cst_100 = arith.constant dense<0.000000e+00> : vector<24xf32>
      %171 = vector.multi_reduction <add>, %170, %cst_100 [1] : vector<24x32xf32> to vector<24xf32>
      %172 = vector.shape_cast %171 : vector<24xf32> to vector<24x1xf32>
      %cst_101 = arith.constant 3.200000e+01 : f32
      %173 = vector.broadcast %cst_101 : f32 to vector<24x1xf32>
      %174 = arith.divf %172, %173 : vector<24x1xf32>
      %175 = vector.broadcast %167 : vector<24x1xf32> to vector<24x32xf32>
      %176 = arith.subf %161, %175 : vector<24x32xf32>
      %cst_102 = arith.constant 9.99999974E-6 : f32
      %177 = vector.broadcast %cst_102 : f32 to vector<24x1xf32>
      %178 = arith.addf %174, %177 : vector<24x1xf32>
      %179 = math.rsqrt %178 : vector<24x1xf32>
      %180 = vector.broadcast %179 : vector<24x1xf32> to vector<24x32xf32>
      %181 = arith.mulf %176, %180 : vector<24x32xf32>
      %182 = vector.broadcast %162 : vector<1x32xf32> to vector<24x32xf32>
      %183 = arith.mulf %181, %182 : vector<24x32xf32>
      %184 = vector.broadcast %163 : vector<1x32xf32> to vector<24x32xf32>
      %185 = arith.addf %183, %184 : vector<24x32xf32>
      %c0_103 = arith.constant 0 : index
      %c0_104 = arith.constant 0 : index
      %186 = vector.load %arg21[%c0_103, %c0_104] : memref<24x32xf32, #tpu.memory_space<vmem>>, vector<24x32xf32>
      tpu.vector_store %arg21[%c0_103, %c0_104], %185 {strides = array<i32>} : memref<24x32xf32, #tpu.memory_space<vmem>>, vector<24x32xf32>,
    } else {
    }
    %c0 = arith.constant 0 : index
    %c0_1 = arith.constant 0 : index
    %3 = vector.load %arg21[%c0, %c0_1] : memref<24x32xf32, #tpu.memory_space<vmem>>, vector<24x32xf32>
    %c0_2 = arith.constant 0 : index
    %c0_3 = arith.constant 0 : index
    %4 = vector.load %arg3[%c0_2, %c0_3] : memref<24x24xf32, #tpu.memory_space<vmem>>, vector<24x24xf32>
    %c0_4 = arith.constant 0 : index
    %c0_5 = arith.constant 0 : index
    %c0_6 = arith.constant 0 : index
    %5 = vector.load %arg6[%c0_4, %c0_5, %c0_6] : memref<1x32x96xbf16, #tpu.memory_space<vmem>>, vector<1x32x96xbf16>
    %6 = vector.shape_cast %5 : vector<1x32x96xbf16> to vector<32x96xbf16>
    %7 = arith.truncf %3 : vector<24x32xf32> to vector<24x32xbf16>
    %cst = arith.constant dense<0.000000e+00> : vector<24x96xf32>
    %8 = tpu.matmul %7, %6, %cst {dimension_numbers = #tpu.dot_dimension_numbers<[1], [0], [0], [1], [0, 0, 1, 1], [], []>} : vector<24x32xbf16>, vector<32x96xbf16>, vector<24x96xf32> -> vector<24x96xf32>
    %c0_7 = arith.constant 0 : index
    %c0_8 = arith.constant 0 : index
    %c0_9 = arith.constant 0 : index
    %9 = vector.load %arg7[%c0_7, %c0_8, %c0_9] : memref<1x1x96xf32, #tpu.memory_space<vmem>>, vector<1x1x96xf32>
    %10 = vector.shape_cast %9 : vector<1x1x96xf32> to vector<1x96xf32>
    %11 = vector.broadcast %10 : vector<1x96xf32> to vector<24x96xf32>
    %12 = arith.addf %8, %11 : vector<24x96xf32>
    %13 = vector.extract_strided_slice %12 {offsets = [0, 0], sizes = [24, 32], strides = [1, 1]} : vector<24x96xf32> to vector<24x32xf32>
    %14 = vector.extract_strided_slice %12 {offsets = [0, 32], sizes = [24, 32], strides = [1, 1]} : vector<24x96xf32> to vector<24x32xf32>
    %15 = vector.extract_strided_slice %12 {offsets = [0, 64], sizes = [24, 32], strides = [1, 1]} : vector<24x96xf32> to vector<24x32xf32>
    %cst_10 = arith.constant 0.000000e+00 : f32
    %16 = vector.broadcast %cst_10 : f32 to vector<24x32xf32>
    %17 = vector.extract_strided_slice %13 {offsets = [0, 0], sizes = [24, 16], strides = [1, 1]} : vector<24x32xf32> to vector<24x16xf32>
    %18 = vector.extract_strided_slice %14 {offsets = [0, 0], sizes = [24, 16], strides = [1, 1]} : vector<24x32xf32> to vector<24x16xf32>
    %19 = vector.extract_strided_slice %15 {offsets = [0, 0], sizes = [24, 16], strides = [1, 1]} : vector<24x32xf32> to vector<24x16xf32>
    %20 = tpu.transpose %18, [1, 0] : vector<24x16xf32> -> vector<16x24xf32>
    %cst_11 = arith.constant dense<0.000000e+00> : vector<24x24xf32>
    %21 = tpu.matmul %17, %20, %cst_11 {dimension_numbers = #tpu.dot_dimension_numbers<[1], [0], [0], [1], [0, 0, 1, 1], [], []>} : vector<24x16xf32>, vector<16x24xf32>, vector<24x24xf32> -> vector<24x24xf32>
    %cst_12 = arith.constant 2.500000e-01 : f32
    %22 = vector.broadcast %cst_12 : f32 to vector<24x24xf32>
    %23 = arith.mulf %21, %22 : vector<24x24xf32>
    %24 = arith.addf %23, %4 : vector<24x24xf32>
    %cst_13 = arith.constant dense<0xFF800000> : vector<24xf32>
    %25 = vector.multi_reduction <maximumf>, %24, %cst_13 [1] : vector<24x24xf32> to vector<24xf32>
    %26 = vector.shape_cast %25 : vector<24xf32> to vector<24x1xf32>
    %27 = vector.broadcast %26 : vector<24x1xf32> to vector<24x24xf32>
    %28 = arith.subf %24, %27 : vector<24x24xf32>
    %29 = math.exp %28 : vector<24x24xf32>
    %cst_14 = arith.constant dense<0.000000e+00> : vector<24xf32>
    %30 = vector.multi_reduction <add>, %29, %cst_14 [1] : vector<24x24xf32> to vector<24xf32>
    %31 = vector.shape_cast %30 : vector<24xf32> to vector<24x1xf32>
    %32 = tpu.reciprocal %31 {approx = true} : vector<24x1xf32> -> vector<24x1xf32>
    %33 = vector.broadcast %32 : vector<24x1xf32> to vector<24x24xf32>
    %34 = arith.mulf %29, %33 : vector<24x24xf32>
    %c0_15 = arith.constant 0 : index
    %c0_16 = arith.constant 0 : index
    %c0_17 = arith.constant 0 : index
    %c0_18 = arith.constant 0 : index
    %c0_19 = arith.constant 0 : index
    %35 = vector.load %arg19[%c0_15, %c0_16, %c0_17, %c0_18, %c0_19] : memref<1x1x2x24x24xf32, #tpu.memory_space<vmem>>, vector<1x1x1x24x24xf32>
    %36 = vector.shape_cast %35 : vector<1x1x1x24x24xf32> to vector<24x24xf32>
    %37 = vector.shape_cast %34 : vector<24x24xf32> to vector<1x1x1x24x24xf32>
    tpu.vector_store %arg19[%c0_15, %c0_16, %c0_17, %c0_18, %c0_19], %37 {strides = array<i32>} : memref<1x1x2x24x24xf32, #tpu.memory_space<vmem>>, vector<1x1x1x24x24xf32>,
    %cst_20 = arith.constant dense<0.000000e+00> : vector<24x16xf32>
    %38 = tpu.matmul %34, %19, %cst_20 {dimension_numbers = #tpu.dot_dimension_numbers<[1], [0], [0], [1], [0, 0, 1, 1], [], []>} : vector<24x24xf32>, vector<24x16xf32>, vector<24x16xf32> -> vector<24x16xf32>
    %c0_21 = arith.constant 0 : index
    %c0_22 = arith.constant 0 : index
    %c0_23 = arith.constant 0 : index
    %c0_24 = arith.constant 0 : index
    %39 = vector.load %arg8[%c0_21, %c0_22, %c0_23, %c0_24] : memref<1x2x16x32xbf16, #tpu.memory_space<vmem>>, vector<1x1x16x32xbf16>
    %40 = vector.shape_cast %39 : vector<1x1x16x32xbf16> to vector<16x32xbf16>
    %41 = arith.truncf %38 : vector<24x16xf32> to vector<24x16xbf16>
    %cst_25 = arith.constant dense<0.000000e+00> : vector<24x32xf32>
    %42 = tpu.matmul %41, %40, %cst_25 {dimension_numbers = #tpu.dot_dimension_numbers<[1], [0], [0], [1], [0, 0, 1, 1], [], []>} : vector<24x16xbf16>, vector<16x32xbf16>, vector<24x32xf32> -> vector<24x32xf32>
    %43 = arith.addf %16, %42 : vector<24x32xf32>
    %44 = vector.extract_strided_slice %13 {offsets = [0, 16], sizes = [24, 16], strides = [1, 1]} : vector<24x32xf32> to vector<24x16xf32>
    %45 = vector.extract_strided_slice %14 {offsets = [0, 16], sizes = [24, 16], strides = [1, 1]} : vector<24x32xf32> to vector<24x16xf32>
    %46 = vector.extract_strided_slice %15 {offsets = [0, 16], sizes = [24, 16], strides = [1, 1]} : vector<24x32xf32> to vector<24x16xf32>
    %47 = tpu.transpose %45, [1, 0] : vector<24x16xf32> -> vector<16x24xf32>
    %cst_26 = arith.constant dense<0.000000e+00> : vector<24x24xf32>
    %48 = tpu.matmul %44, %47, %cst_26 {dimension_numbers = #tpu.dot_dimension_numbers<[1], [0], [0], [1], [0, 0, 1, 1], [], []>} : vector<24x16xf32>, vector<16x24xf32>, vector<24x24xf32> -> vector<24x24xf32>
    %cst_27 = arith.constant 2.500000e-01 : f32
    %49 = vector.broadcast %cst_27 : f32 to vector<24x24xf32>
    %50 = arith.mulf %48, %49 : vector<24x24xf32>
    %51 = arith.addf %50, %4 : vector<24x24xf32>
    %cst_28 = arith.constant dense<0xFF800000> : vector<24xf32>
    %52 = vector.multi_reduction <maximumf>, %51, %cst_28 [1] : vector<24x24xf32> to vector<24xf32>
    %53 = vector.shape_cast %52 : vector<24xf32> to vector<24x1xf32>
    %54 = vector.broadcast %53 : vector<24x1xf32> to vector<24x24xf32>
    %55 = arith.subf %51, %54 : vector<24x24xf32>
    %56 = math.exp %55 : vector<24x24xf32>
    %cst_29 = arith.constant dense<0.000000e+00> : vector<24xf32>
    %57 = vector.multi_reduction <add>, %56, %cst_29 [1] : vector<24x24xf32> to vector<24xf32>
    %58 = vector.shape_cast %57 : vector<24xf32> to vector<24x1xf32>
    %59 = tpu.reciprocal %58 {approx = true} : vector<24x1xf32> -> vector<24x1xf32>
    %60 = vector.broadcast %59 : vector<24x1xf32> to vector<24x24xf32>
    %61 = arith.mulf %56, %60 : vector<24x24xf32>
    %c0_30 = arith.constant 0 : index
    %c0_31 = arith.constant 0 : index
    %c1 = arith.constant 1 : index
    %c0_32 = arith.constant 0 : index
    %c0_33 = arith.constant 0 : index
    %62 = vector.load %arg19[%c0_30, %c0_31, %c1, %c0_32, %c0_33] : memref<1x1x2x24x24xf32, #tpu.memory_space<vmem>>, vector<1x1x1x24x24xf32>
    %63 = vector.shape_cast %62 : vector<1x1x1x24x24xf32> to vector<24x24xf32>
    %64 = vector.shape_cast %61 : vector<24x24xf32> to vector<1x1x1x24x24xf32>
    tpu.vector_store %arg19[%c0_30, %c0_31, %c1, %c0_32, %c0_33], %64 {strides = array<i32>} : memref<1x1x2x24x24xf32, #tpu.memory_space<vmem>>, vector<1x1x1x24x24xf32>,
    %cst_34 = arith.constant dense<0.000000e+00> : vector<24x16xf32>
    %65 = tpu.matmul %61, %46, %cst_34 {dimension_numbers = #tpu.dot_dimension_numbers<[1], [0], [0], [1], [0, 0, 1, 1], [], []>} : vector<24x24xf32>, vector<24x16xf32>, vector<24x16xf32> -> vector<24x16xf32>
    %c0_35 = arith.constant 0 : index
    %c1_36 = arith.constant 1 : index
    %c0_37 = arith.constant 0 : index
    %c0_38 = arith.constant 0 : index
    %66 = vector.load %arg8[%c0_35, %c1_36, %c0_37, %c0_38] : memref<1x2x16x32xbf16, #tpu.memory_space<vmem>>, vector<1x1x16x32xbf16>
    %67 = vector.shape_cast %66 : vector<1x1x16x32xbf16> to vector<16x32xbf16>
    %68 = arith.truncf %65 : vector<24x16xf32> to vector<24x16xbf16>
    %cst_39 = arith.constant dense<0.000000e+00> : vector<24x32xf32>
    %69 = tpu.matmul %68, %67, %cst_39 {dimension_numbers = #tpu.dot_dimension_numbers<[1], [0], [0], [1], [0, 0, 1, 1], [], []>} : vector<24x16xbf16>, vector<16x32xbf16>, vector<24x32xf32> -> vector<24x32xf32>
    %70 = arith.addf %43, %69 : vector<24x32xf32>
    %71 = arith.addf %3, %70 : vector<24x32xf32>
    %c0_40 = arith.constant 0 : index
    %c0_41 = arith.constant 0 : index
    %c0_42 = arith.constant 0 : index
    %72 = vector.load %arg9[%c0_40, %c0_41, %c0_42] : memref<1x1x32xf32, #tpu.memory_space<vmem>>, vector<1x1x32xf32>
    %73 = vector.shape_cast %72 : vector<1x1x32xf32> to vector<1x32xf32>
    %74 = vector.broadcast %73 : vector<1x32xf32> to vector<24x32xf32>
    %75 = arith.addf %71, %74 : vector<24x32xf32>
    %c0_43 = arith.constant 0 : index
    %c0_44 = arith.constant 0 : index
    %c0_45 = arith.constant 0 : index
    %76 = vector.load %arg14[%c0_43, %c0_44, %c0_45] : memref<1x1x32xf32, #tpu.memory_space<vmem>>, vector<1x1x32xf32>
    %77 = vector.shape_cast %76 : vector<1x1x32xf32> to vector<1x32xf32>
    %c0_46 = arith.constant 0 : index
    %c0_47 = arith.constant 0 : index
    %c0_48 = arith.constant 0 : index
    %78 = vector.load %arg15[%c0_46, %c0_47, %c0_48] : memref<1x1x32xf32, #tpu.memory_space<vmem>>, vector<1x1x32xf32>
    %79 = vector.shape_cast %78 : vector<1x1x32xf32> to vector<1x32xf32>
    %cst_49 = arith.constant dense<0.000000e+00> : vector<24xf32>
    %80 = vector.multi_reduction <add>, %75, %cst_49 [1] : vector<24x32xf32> to vector<24xf32>
    %81 = vector.shape_cast %80 : vector<24xf32> to vector<24x1xf32>
    %cst_50 = arith.constant 3.200000e+01 : f32
    %82 = vector.broadcast %cst_50 : f32 to vector<24x1xf32>
    %83 = arith.divf %81, %82 : vector<24x1xf32>
    %84 = vector.broadcast %83 : vector<24x1xf32> to vector<24x32xf32>
    %85 = arith.subf %75, %84 : vector<24x32xf32>
    %86 = arith.mulf %85, %85 : vector<24x32xf32>
    %cst_51 = arith.constant dense<0.000000e+00> : vector<24xf32>
    %87 = vector.multi_reduction <add>, %86, %cst_51 [1] : vector<24x32xf32> to vector<24xf32>
    %88 = vector.shape_cast %87 : vector<24xf32> to vector<24x1xf32>
    %cst_52 = arith.constant 3.200000e+01 : f32
    %89 = vector.broadcast %cst_52 : f32 to vector<24x1xf32>
    %90 = arith.divf %88, %89 : vector<24x1xf32>
    %91 = vector.broadcast %83 : vector<24x1xf32> to vector<24x32xf32>
    %92 = arith.subf %75, %91 : vector<24x32xf32>
    %cst_53 = arith.constant 9.99999974E-6 : f32
    %93 = vector.broadcast %cst_53 : f32 to vector<24x1xf32>
    %94 = arith.addf %90, %93 : vector<24x1xf32>
    %95 = math.rsqrt %94 : vector<24x1xf32>
    %96 = vector.broadcast %95 : vector<24x1xf32> to vector<24x32xf32>
    %97 = arith.mulf %92, %96 : vector<24x32xf32>
    %98 = vector.broadcast %77 : vector<1x32xf32> to vector<24x32xf32>
    %99 = arith.mulf %97, %98 : vector<24x32xf32>
    %100 = vector.broadcast %79 : vector<1x32xf32> to vector<24x32xf32>
    %101 = arith.addf %99, %100 : vector<24x32xf32>
    %c0_54 = arith.constant 0 : index
    %c0_55 = arith.constant 0 : index
    %c0_56 = arith.constant 0 : index
    %102 = vector.load %arg10[%c0_54, %c0_55, %c0_56] : memref<1x32x128xbf16, #tpu.memory_space<vmem>>, vector<1x32x128xbf16>
    %103 = vector.shape_cast %102 : vector<1x32x128xbf16> to vector<32x128xbf16>
    %104 = arith.truncf %101 : vector<24x32xf32> to vector<24x32xbf16>
    %cst_57 = arith.constant dense<0.000000e+00> : vector<24x128xf32>
    %105 = tpu.matmul %104, %103, %cst_57 {dimension_numbers = #tpu.dot_dimension_numbers<[1], [0], [0], [1], [0, 0, 1, 1], [], []>} : vector<24x32xbf16>, vector<32x128xbf16>, vector<24x128xf32> -> vector<24x128xf32>
    %c0_58 = arith.constant 0 : index
    %c0_59 = arith.constant 0 : index
    %c0_60 = arith.constant 0 : index
    %106 = vector.load %arg11[%c0_58, %c0_59, %c0_60] : memref<1x1x128xf32, #tpu.memory_space<vmem>>, vector<1x1x128xf32>
    %107 = vector.shape_cast %106 : vector<1x1x128xf32> to vector<1x128xf32>
    %108 = vector.broadcast %107 : vector<1x128xf32> to vector<24x128xf32>
    %109 = arith.addf %105, %108 : vector<24x128xf32>
    %cst_61 = arith.constant 5.000000e-01 : f32
    %110 = vector.broadcast %cst_61 : f32 to vector<24x128xf32>
    %111 = arith.mulf %110, %109 : vector<24x128xf32>
    %cst_62 = arith.constant 0.707106769 : f32
    %112 = vector.broadcast %cst_62 : f32 to vector<24x128xf32>
    %113 = arith.mulf %109, %112 : vector<24x128xf32>
    %114 = math.erf %113 : vector<24x128xf32>
    %cst_63 = arith.constant 1.000000e+00 : f32
    %115 = vector.broadcast %cst_63 : f32 to vector<24x128xf32>
    %116 = arith.addf %115, %114 : vector<24x128xf32>
    %117 = arith.mulf %111, %116 : vector<24x128xf32>
    %c0_64 = arith.constant 0 : index
    %c0_65 = arith.constant 0 : index
    %c0_66 = arith.constant 0 : index
    %c0_67 = arith.constant 0 : index
    %118 = vector.load %arg20[%c0_64, %c0_65, %c0_66, %c0_67] : memref<1x1x24x128xf32, #tpu.memory_space<vmem>>, vector<1x1x24x128xf32>
    %119 = vector.shape_cast %118 : vector<1x1x24x128xf32> to vector<24x128xf32>
    %120 = vector.shape_cast %117 : vector<24x128xf32> to vector<1x1x24x128xf32>
    tpu.vector_store %arg20[%c0_64, %c0_65, %c0_66, %c0_67], %120 {strides = array<i32>} : memref<1x1x24x128xf32, #tpu.memory_space<vmem>>, vector<1x1x24x128xf32>,
    %c0_68 = arith.constant 0 : index
    %c0_69 = arith.constant 0 : index
    %c0_70 = arith.constant 0 : index
    %121 = vector.load %arg12[%c0_68, %c0_69, %c0_70] : memref<1x128x32xbf16, #tpu.memory_space<vmem>>, vector<1x128x32xbf16>
    %122 = vector.shape_cast %121 : vector<1x128x32xbf16> to vector<128x32xbf16>
    %123 = arith.truncf %117 : vector<24x128xf32> to vector<24x128xbf16>
    %cst_71 = arith.constant dense<0.000000e+00> : vector<24x32xf32>
    %124 = tpu.matmul %123, %122, %cst_71 {dimension_numbers = #tpu.dot_dimension_numbers<[1], [0], [0], [1], [0, 0, 1, 1], [], []>} : vector<24x128xbf16>, vector<128x32xbf16>, vector<24x32xf32> -> vector<24x32xf32>
    %125 = arith.addf %101, %124 : vector<24x32xf32>
    %c0_72 = arith.constant 0 : index
    %c0_73 = arith.constant 0 : index
    %c0_74 = arith.constant 0 : index
    %126 = vector.load %arg13[%c0_72, %c0_73, %c0_74] : memref<1x1x32xf32, #tpu.memory_space<vmem>>, vector<1x1x32xf32>
    %127 = vector.shape_cast %126 : vector<1x1x32xf32> to vector<1x32xf32>
    %128 = vector.broadcast %127 : vector<1x32xf32> to vector<24x32xf32>
    %129 = arith.addf %125, %128 : vector<24x32xf32>
    %c0_75 = arith.constant 0 : index
    %c0_76 = arith.constant 0 : index
    %c0_77 = arith.constant 0 : index
    %130 = vector.load %arg16[%c0_75, %c0_76, %c0_77] : memref<1x1x32xf32, #tpu.memory_space<vmem>>, vector<1x1x32xf32>
    %131 = vector.shape_cast %130 : vector<1x1x32xf32> to vector<1x32xf32>
    %c0_78 = arith.constant 0 : index
    %c0_79 = arith.constant 0 : index
    %c0_80 = arith.constant 0 : index
    %132 = vector.load %arg17[%c0_78, %c0_79, %c0_80] : memref<1x1x32xf32, #tpu.memory_space<vmem>>, vector<1x1x32xf32>
    %133 = vector.shape_cast %132 : vector<1x1x32xf32> to vector<1x32xf32>
    %cst_81 = arith.constant dense<0.000000e+00> : vector<24xf32>
    %134 = vector.multi_reduction <add>, %129, %cst_81 [1] : vector<24x32xf32> to vector<24xf32>
    %135 = vector.shape_cast %134 : vector<24xf32> to vector<24x1xf32>
    %cst_82 = arith.constant 3.200000e+01 : f32
    %136 = vector.broadcast %cst_82 : f32 to vector<24x1xf32>
    %137 = arith.divf %135, %136 : vector<24x1xf32>
    %138 = vector.broadcast %137 : vector<24x1xf32> to vector<24x32xf32>
    %139 = arith.subf %129, %138 : vector<24x32xf32>
    %140 = arith.mulf %139, %139 : vector<24x32xf32>
    %cst_83 = arith.constant dense<0.000000e+00> : vector<24xf32>
    %141 = vector.multi_reduction <add>, %140, %cst_83 [1] : vector<24x32xf32> to vector<24xf32>
    %142 = vector.shape_cast %141 : vector<24xf32> to vector<24x1xf32>
    %cst_84 = arith.constant 3.200000e+01 : f32
    %143 = vector.broadcast %cst_84 : f32 to vector<24x1xf32>
    %144 = arith.divf %142, %143 : vector<24x1xf32>
    %145 = vector.broadcast %137 : vector<24x1xf32> to vector<24x32xf32>
    %146 = arith.subf %129, %145 : vector<24x32xf32>
    %cst_85 = arith.constant 9.99999974E-6 : f32
    %147 = vector.broadcast %cst_85 : f32 to vector<24x1xf32>
    %148 = arith.addf %144, %147 : vector<24x1xf32>
    %149 = math.rsqrt %148 : vector<24x1xf32>
    %150 = vector.broadcast %149 : vector<24x1xf32> to vector<24x32xf32>
    %151 = arith.mulf %146, %150 : vector<24x32xf32>
    %152 = vector.broadcast %131 : vector<1x32xf32> to vector<24x32xf32>
    %153 = arith.mulf %151, %152 : vector<24x32xf32>
    %154 = vector.broadcast %133 : vector<1x32xf32> to vector<24x32xf32>
    %155 = arith.addf %153, %154 : vector<24x32xf32>
    %c0_86 = arith.constant 0 : index
    %c0_87 = arith.constant 0 : index
    %156 = vector.load %arg21[%c0_86, %c0_87] : memref<24x32xf32, #tpu.memory_space<vmem>>, vector<24x32xf32>
    tpu.vector_store %arg21[%c0_86, %c0_87], %155 {strides = array<i32>} : memref<24x32xf32, #tpu.memory_space<vmem>>, vector<24x32xf32>,
    %c0_88 = arith.constant 0 : index
    %c0_89 = arith.constant 0 : index
    %c0_90 = arith.constant 0 : index
    %157 = vector.load %arg18[%c0_88, %c0_89, %c0_90] : memref<1x24x32xf32, #tpu.memory_space<vmem>>, vector<1x24x32xf32>
    %158 = vector.shape_cast %157 : vector<1x24x32xf32> to vector<24x32xf32>
    %159 = vector.shape_cast %155 : vector<24x32xf32> to vector<1x24x32xf32>
    tpu.vector_store %arg18[%c0_88, %c0_89, %c0_90], %159 {strides = array<i32>} : memref<1x24x32xf32, #tpu.memory_space<vmem>>, vector<1x24x32xf32>,
    return
  }
  func.func @transform_0(%arg0: i32, %arg1: i32) -> (i32, i32, i32) {
    %c0_i32 = arith.constant 0 : i32
    %c0_i32_0 = arith.constant 0 : i32
    %c0_i32_1 = arith.constant 0 : i32
    return %arg0, %c0_i32, %c0_i32_0 : i32, i32, i32
  }
  func.func @transform_1(%arg0: i32, %arg1: i32) -> (i32, i32) {
    %c0_i32 = arith.constant 0 : i32
    %c0_i32_0 = arith.constant 0 : i32
    %c0_i32_1 = arith.constant 0 : i32
    return %c0_i32, %c0_i32_0 : i32, i32
  }
  func.func @transform_2(%arg0: i32, %arg1: i32) -> (i32, i32) {
    %c0_i32 = arith.constant 0 : i32
    %c0_i32_0 = arith.constant 0 : i32
    %c0_i32_1 = arith.constant 0 : i32
    return %c0_i32, %c0_i32_0 : i32, i32
  }
  func.func @transform_3(%arg0: i32, %arg1: i32) -> (i32, i32) {
    %c0_i32 = arith.constant 0 : i32
    %c0_i32_0 = arith.constant 0 : i32
    %c0_i32_1 = arith.constant 0 : i32
    return %c0_i32, %c0_i32_0 : i32, i32
  }
  func.func @transform_4(%arg0: i32, %arg1: i32) -> (i32, i32, i32) {
    %c0_i32 = arith.constant 0 : i32
    %c0_i32_0 = arith.constant 0 : i32
    %c0_i32_1 = arith.constant 0 : i32
    return %arg1, %c0_i32, %c0_i32_0 : i32, i32, i32
  }
  func.func @transform_5(%arg0: i32, %arg1: i32) -> (i32, i32, i32) {
    %c0_i32 = arith.constant 0 : i32
    %c0_i32_0 = arith.constant 0 : i32
    %c0_i32_1 = arith.constant 0 : i32
    return %arg1, %c0_i32, %c0_i32_0 : i32, i32, i32
  }
  func.func @transform_6(%arg0: i32, %arg1: i32) -> (i32, i32, i32, i32) {
    %c0_i32 = arith.constant 0 : i32
    %c0_i32_0 = arith.constant 0 : i32
    %c0_i32_1 = arith.constant 0 : i32
    %c0_i32_2 = arith.constant 0 : i32
    return %arg1, %c0_i32, %c0_i32_0, %c0_i32_1 : i32, i32, i32, i32
  }
  func.func @transform_7(%arg0: i32, %arg1: i32) -> (i32, i32, i32) {
    %c0_i32 = arith.constant 0 : i32
    %c0_i32_0 = arith.constant 0 : i32
    %c0_i32_1 = arith.constant 0 : i32
    return %arg1, %c0_i32, %c0_i32_0 : i32, i32, i32
  }
  func.func @transform_8(%arg0: i32, %arg1: i32) -> (i32, i32, i32) {
    %c0_i32 = arith.constant 0 : i32
    %c0_i32_0 = arith.constant 0 : i32
    %c0_i32_1 = arith.constant 0 : i32
    return %arg1, %c0_i32, %c0_i32_0 : i32, i32, i32
  }
  func.func @transform_9(%arg0: i32, %arg1: i32) -> (i32, i32, i32) {
    %c0_i32 = arith.constant 0 : i32
    %c0_i32_0 = arith.constant 0 : i32
    %c0_i32_1 = arith.constant 0 : i32
    return %arg1, %c0_i32, %c0_i32_0 : i32, i32, i32
  }
  func.func @transform_10(%arg0: i32, %arg1: i32) -> (i32, i32, i32) {
    %c0_i32 = arith.constant 0 : i32
    %c0_i32_0 = arith.constant 0 : i32
    %c0_i32_1 = arith.constant 0 : i32
    return %arg1, %c0_i32, %c0_i32_0 : i32, i32, i32
  }
  func.func @transform_11(%arg0: i32, %arg1: i32) -> (i32, i32, i32) {
    %c0_i32 = arith.constant 0 : i32
    %c0_i32_0 = arith.constant 0 : i32
    %c0_i32_1 = arith.constant 0 : i32
    return %arg1, %c0_i32, %c0_i32_0 : i32, i32, i32
  }
  func.func @transform_12(%arg0: i32, %arg1: i32) -> (i32, i32, i32) {
    %c0_i32 = arith.constant 0 : i32
    %c0_i32_0 = arith.constant 0 : i32
    %c0_i32_1 = arith.constant 0 : i32
    return %arg1, %c0_i32, %c0_i32_0 : i32, i32, i32
  }
  func.func @transform_13(%arg0: i32, %arg1: i32) -> (i32, i32, i32) {
    %c0_i32 = arith.constant 0 : i32
    %c0_i32_0 = arith.constant 0 : i32
    %c0_i32_1 = arith.constant 0 : i32
    return %arg1, %c0_i32, %c0_i32_0 : i32, i32, i32
  }
  func.func @transform_14(%arg0: i32, %arg1: i32) -> (i32, i32, i32) {
    %c0_i32 = arith.constant 0 : i32
    %c0_i32_0 = arith.constant 0 : i32
    %c0_i32_1 = arith.constant 0 : i32
    return %arg1, %c0_i32, %c0_i32_0 : i32, i32, i32
  }
  func.func @transform_15(%arg0: i32, %arg1: i32) -> (i32, i32, i32) {
    %c0_i32 = arith.constant 0 : i32
    %c0_i32_0 = arith.constant 0 : i32
    %c0_i32_1 = arith.constant 0 : i32
    return %arg1, %c0_i32, %c0_i32_0 : i32, i32, i32
  }
  func.func @transform_16(%arg0: i32, %arg1: i32) -> (i32, i32, i32) {
    %c0_i32 = arith.constant 0 : i32
    %c0_i32_0 = arith.constant 0 : i32
    %c0_i32_1 = arith.constant 0 : i32
    return %arg0, %c0_i32, %c0_i32_0 : i32, i32, i32
  }
  func.func @transform_17(%arg0: i32, %arg1: i32) -> (i32, i32, i32, i32, i32) {
    %c0_i32 = arith.constant 0 : i32
    %c0_i32_0 = arith.constant 0 : i32
    %c0_i32_1 = arith.constant 0 : i32
    %c0_i32_2 = arith.constant 0 : i32
    return %arg1, %arg0, %c0_i32, %c0_i32_0, %c0_i32_1 : i32, i32, i32, i32, i32
  }
  func.func @transform_18(%arg0: i32, %arg1: i32) -> (i32, i32, i32, i32) {
    %c0_i32 = arith.constant 0 : i32
    %c0_i32_0 = arith.constant 0 : i32
    %c0_i32_1 = arith.constant 0 : i32
    return %arg1, %arg0, %c0_i32, %c0_i32_0 : i32, i32, i32, i32
  }
}

</mosaic_0001>

<llo_original>
// kernel: decision_transformer_forward.3
$region0: #{decision_transformer_forward.3}
  #allocation0 [shape = 'u32[]', space=smem, size = 0x4, offset = 0x4, fixed_abs, tag = 'smem constant byte address 0x4 - core index']
  #allocation1 [shape = 'u32[144,128]{1,0:T(1,128)}', space=vmem, size = 0x12000, scoped, tag = 'internal scratch']
  %s0 = inlined_call_operand.vmem [shape: f32[16,32], index: 0, kind: input, shape index: {}]
  %s1 = inlined_call_operand.vmem [shape: f32[16,32], index: 1, kind: input, shape index: {}]
  %s2 = inlined_call_operand.vmem [shape: bf16[32,8], index: 2, kind: input, shape index: {}]
  %s3 = inlined_call_operand.vmem [shape: f32[1,8], index: 3, kind: input, shape index: {}]
  %s4 = inlined_call_operand.vmem [shape: bf16[32,5], index: 4, kind: input, shape index: {}]
  %s5 = inlined_call_operand.vmem [shape: f32[1,5], index: 5, kind: input, shape index: {}]
  %s6 = inlined_call_operand.vmem [shape: f32[16,8], index: 6, kind: output, shape index: {0}]
  %s7 = inlined_call_operand.vmem [shape: f32[16,5], index: 7, kind: output, shape index: {1}]
  %8 = xla_tuple %s6, %s7
  %s9 = sld [smem:[#allocation0]]
  $region42: #{decision_transformer_forward.3} parent=0
    _
  %s11 = ssub.s32 1, %s9
  %s12 = scalar_select 0, %s11, %s9
  // Predicated region
  $region2: #{decision_transformer_forward.3} parent=0 // pred_check
    _
  $region3: #{decision_transformer_forward.3} parent=0 // pred_check_branch
    %14 = sbr.rel (0) target = $region5
  $region4: #{decision_transformer_forward.3} parent=0 // pred_region
    _
  $region5: #{decision_transformer_forward.3} parent=0 // pred_fallthru
    _
  // Predicated region
  $region6: #{decision_transformer_forward.3} parent=0 // pred_check
    _
  $region7: #{decision_transformer_forward.3} parent=0 // pred_check_branch
    %16 = sbr.rel (0) target = $region9
  $region8: #{decision_transformer_forward.3} parent=0 // pred_region
    _
  $region9: #{decision_transformer_forward.3} parent=0 // pred_fallthru
    _
  // Predicated region
  $region10: #{decision_transformer_forward.3} parent=0 // pred_check
    _
  $region11: #{decision_transformer_forward.3} parent=0 // pred_check_branch
    %18 = sbr.rel (0) target = $region13
  $region12: #{decision_transformer_forward.3} parent=0 // pred_region
    _
  $region13: #{decision_transformer_forward.3} parent=0 // pred_fallthru
    _
  // Predicated region
  $region14: #{decision_transformer_forward.3} parent=0 // pred_check
    _
  $region15: #{decision_transformer_forward.3} parent=0 // pred_check_branch
    %20 = sbr.rel (0) target = $region17
  $region16: #{decision_transformer_forward.3} parent=0 // pred_region
    _
  $region17: #{decision_transformer_forward.3} parent=0 // pred_fallthru
    _
  // Predicated region
  $region18: #{decision_transformer_forward.3} parent=0 // pred_check
    _
  $region19: #{decision_transformer_forward.3} parent=0 // pred_check_branch
    %22 = sbr.rel (0) target = $region21
  $region20: #{decision_transformer_forward.3} parent=0 // pred_region
    _
  $region21: #{decision_transformer_forward.3} parent=0 // pred_fallthru
    _
  // Predicated region
  $region22: #{decision_transformer_forward.3} parent=0 // pred_check
    _
  $region23: #{decision_transformer_forward.3} parent=0 // pred_check_branch
    %24 = sbr.rel (0) target = $region25
  $region24: #{decision_transformer_forward.3} parent=0 // pred_region
    _
  $region25: #{decision_transformer_forward.3} parent=0 // pred_fallthru
    _
  %v26 = vld [vmem:[%s2] sm:$0xf]
  %v27 = vld [vmem:[%s2 + $0x4] sm:$0xf]
  %v28 = vld [vmem:[%s2 + $0x8] sm:$0xf]
  %v29 = vld [vmem:[%s2 + $0xc] sm:$0xf]
  %v30 = vld [vmem:[%s0] sm:$0xff]
  %v31 = vld [vmem:[%s0 + $0x8] sm:$0xff]
  %v32 = vpack.c.bf16 %v31, %v30
  %v33 = vld [vmem:[%s3] sm:$0x1]
  %v35 = vlaneseq
  %v36 = vshrl.u32 %v35, 7
  %v37 = vsub.s32 0, %v36
  %v38 = vrot.slane %v33, %v37
  %v44 = vunpack.c.l.b16 %v26
  %v45 = vunpack.c.l.b16 %v27
  %v46 = vunpack.c.l.b16 %v28
  %v47 = vunpack.c.l.b16 %v29
  %v48 = vpack.c.b16 %v45, %v44
  %v49 = vpack.c.b16 %v47, %v46
  %vm52 = vcmask 261120
  %v54 = vsel %vm52, %v32, 0
  %56 = vmatprep.subr.bf16.mxu0 0
  %57 = vmatpush1.bf16.msra.mxu0 0
  %58 = vmatprep.subr.bf16.mxu0 0
  %59 = vmatpush1.bf16.msra.mxu0 0
  %60 = vmatprep.subr.bf16.mxu0 0
  %61 = vmatpush1.bf16.msra.mxu0 0
  %62 = vmatprep.subr.bf16.mxu0 0
  %63 = vmatpush1.bf16.msra.mxu0 0
  %64 = vmatprep.subr.bf16.mxu0 0
  %65 = vmatpush1.bf16.msra.mxu0 0
  %66 = vmatprep.subr.bf16.mxu0 0
  %67 = vmatpush1.bf16.msra.mxu0 0
  %68 = vmatprep.subr.bf16.mxu0 0
  %69 = vmatpush1.bf16.msra.mxu0 %v49
  %70 = vmatprep.subr.bf16.mxu0 0
  %71 = vmatpush1.bf16.msra.mxu0 %v48
  %72 = vmatprep.subr.bf16.mxu0 0
  %73 = vmatpush2.bf16.msra.mxu0 0
  %74 = vmatprep.subr.bf16.mxu0 0
  %75 = vmatpush2.bf16.msra.mxu0 0
  %76 = vmatprep.subr.bf16.mxu0 0
  %77 = vmatpush2.bf16.msra.mxu0 0
  %78 = vmatprep.subr.bf16.mxu0 0
  %79 = vmatpush2.bf16.msra.mxu0 0
  %80 = vmatprep.subr.bf16.mxu0 0
  %81 = vmatpush2.bf16.msra.mxu0 0
  %82 = vmatprep.subr.bf16.mxu0 0
  %83 = vmatpush2.bf16.msra.mxu0 0
  %84 = vmatprep.subr.bf16.mxu0 0
  %85 = vmatpush2.bf16.msra.mxu0 0
  %86 = vmatprep.subr.bf16.mxu0 0
  %87 = vmatpush2.bf16.msra.mxu0 0
  %88 = vmatprep.mubr.bf16.mxu0 0
  %89 = vmatmul.mubr.bf16.gmra.mxu0 %v54
  %v90 = vpop.f32.mrf.mxu0
  %v91 = vadd.f32 %v38, %v90
  %v92 = vpop.f32.mrf.mxu0
  %v93 = vpop.f32.mrf.mxu0
  %v94 = vadd.f32 %v38, %v93
  %v95 = vpop.f32.mrf.mxu0
  %96 = vdwg.mxu0
  %vm97 = vcmask 64512
  %98 = vst.msk [vmem:[%s6] sm:$0xff] %vm97, %v91
  %99 = vst.msk [vmem:[%s6 + $0x8] sm:$0xff] %vm97, %v94
  %v100 = vld [vmem:[%s4] sm:$0xf]
  %v101 = vld [vmem:[%s4 + $0x4] sm:$0xf]
  %v102 = vld [vmem:[%s4 + $0x8] sm:$0xf]
  %v103 = vld [vmem:[%s4 + $0xc] sm:$0xf]
  %v104 = vld [vmem:[%s1] sm:$0xff]
  %v105 = vld [vmem:[%s1 + $0x8] sm:$0xff]
  %v106 = vpack.c.bf16 %v105, %v104
  %v107 = vld [vmem:[%s5] sm:$0x1]
  %v109 = vlaneseq
  %v110 = vshrl.u32 %v109, 7
  %v111 = vsub.s32 0, %v110
  %v112 = vrot.slane %v107, %v111
  %v118 = vunpack.c.l.b16 %v100
  %v119 = vunpack.c.l.b16 %v101
  %v120 = vunpack.c.l.b16 %v102
  %v121 = vunpack.c.l.b16 %v103
  %v122 = vpack.c.b16 %v119, %v118
  %v123 = vpack.c.b16 %v121, %v120
  %v127 = vsel %vm52, %v106, 0
  %129 = vmatprep.subr.bf16.mxu0 0
  %130 = vmatpush1.bf16.msra.mxu0 0
  %131 = vmatprep.subr.bf16.mxu0 0
  %132 = vmatpush1.bf16.msra.mxu0 0
  %133 = vmatprep.subr.bf16.mxu0 0
  %134 = vmatpush1.bf16.msra.mxu0 0
  %135 = vmatprep.subr.bf16.mxu0 0
  %136 = vmatpush1.bf16.msra.mxu0 0
  %137 = vmatprep.subr.bf16.mxu0 0
  %138 = vmatpush1.bf16.msra.mxu0 0
  %139 = vmatprep.subr.bf16.mxu0 0
  %140 = vmatpush1.bf16.msra.mxu0 0
  %141 = vmatprep.subr.bf16.mxu0 0
  %142 = vmatpush1.bf16.msra.mxu0 %v123
  %143 = vmatprep.subr.bf16.mxu0 0
  %144 = vmatpush1.bf16.msra.mxu0 %v122
  %145 = vmatprep.subr.bf16.mxu0 0
  %146 = vmatpush2.bf16.msra.mxu0 0
  %147 = vmatprep.subr.bf16.mxu0 0
  %148 = vmatpush2.bf16.msra.mxu0 0
  %149 = vmatprep.subr.bf16.mxu0 0
  %150 = vmatpush2.bf16.msra.mxu0 0
  %151 = vmatprep.subr.bf16.mxu0 0
  %152 = vmatpush2.bf16.msra.mxu0 0
  %153 = vmatprep.subr.bf16.mxu0 0
  %154 = vmatpush2.bf16.msra.mxu0 0
  %155 = vmatprep.subr.bf16.mxu0 0
  %156 = vmatpush2.bf16.msra.mxu0 0
  %157 = vmatprep.subr.bf16.mxu0 0
  %158 = vmatpush2.bf16.msra.mxu0 0
  %159 = vmatprep.subr.bf16.mxu0 0
  %160 = vmatpush2.bf16.msra.mxu0 0
  %161 = vmatprep.mubr.bf16.mxu0 0
  %162 = vmatmul.mubr.bf16.gmra.mxu0 %v127
  %v163 = vpop.f32.mrf.mxu0
  %v164 = vadd.f32 %v112, %v163
  %v165 = vpop.f32.mrf.mxu0
  %v166 = vpop.f32.mrf.mxu0
  %v167 = vadd.f32 %v112, %v166
  %v168 = vpop.f32.mrf.mxu0
  %169 = vdwg.mxu0
  %vm170 = vcmask 39936
  %171 = vst.msk [vmem:[%s7] sm:$0xff] %vm170, %v164
  %172 = vst.msk [vmem:[%s7 + $0x8] sm:$0xff] %vm170, %v167
  // Predicated region
  $region26: #{decision_transformer_forward.3} parent=0 // pred_check
    _
  $region27: #{decision_transformer_forward.3} parent=0 // pred_check_branch
    %174 = sbr.rel (0) target = $region29
  $region28: #{decision_transformer_forward.3} parent=0 // pred_region
    _
  $region29: #{decision_transformer_forward.3} parent=0 // pred_fallthru
    _
  // Predicated region
  $region30: #{decision_transformer_forward.3} parent=0 // pred_check
    _
  $region31: #{decision_transformer_forward.3} parent=0 // pred_check_branch
    %176 = sbr.rel (0) target = $region33
  $region32: #{decision_transformer_forward.3} parent=0 // pred_region
    _
  $region33: #{decision_transformer_forward.3} parent=0 // pred_fallthru
    _
  // Predicated region
  $region34: #{decision_transformer_forward.3} parent=0 // pred_check
    _
  $region35: #{decision_transformer_forward.3} parent=0 // pred_check_branch
    %178 = sbr.rel (0) target = $region37
  $region36: #{decision_transformer_forward.3} parent=0 // pred_region
    _
  $region37: #{decision_transformer_forward.3} parent=0 // pred_fallthru
    _
  // Predicated region
  $region38: #{decision_transformer_forward.3} parent=0 // pred_check
    _
  $region39: #{decision_transformer_forward.3} parent=0 // pred_check_branch
    %180 = sbr.rel (0) target = $region41
  $region40: #{decision_transformer_forward.3} parent=0 // pred_region
    _
  $region41: #{decision_transformer_forward.3} parent=0 // pred_fallthru
    _

// kernel: decision_transformer_forward.2
$region0: #{decision_transformer_forward.2}
  #allocation0 [shape = 'u32[]', space=smem, size = 0x4, offset = 0x4, fixed_abs, tag = 'smem constant byte address 0x4 - core index']
  #allocation1 [shape = 'u32[144,128]{1,0:T(1,128)}', space=vmem, size = 0x12000, scoped, tag = 'internal scratch']
  #allocation2 [shape = 'f32[24,32]{1,0:T(8,128)}', space=vmem, size = 0x3000, scoped, tag = 'scratch operand']
  %s0 = inlined_call_operand.vmem [shape: f32[2,24,32], index: 0, kind: input, shape index: {}]
  %s1 = inlined_call_operand.vmem [shape: f32[24,24], index: 1, kind: input, shape index: {}]
  %s2 = inlined_call_operand.vmem [shape: f32[1,32], index: 2, kind: input, shape index: {}]
  %s3 = inlined_call_operand.vmem [shape: f32[1,32], index: 3, kind: input, shape index: {}]
  %s4 = inlined_call_operand.vmem [shape: bf16[2,32,96], index: 4, kind: input, shape index: {}]
  %s5 = inlined_call_operand.vmem [shape: f32[2,1,96], index: 5, kind: input, shape index: {}]
  %s6 = inlined_call_operand.vmem [shape: bf16[2,2,16,32], index: 6, kind: input, shape index: {}]
  %s7 = inlined_call_operand.vmem [shape: f32[2,1,32], index: 7, kind: input, shape index: {}]
  %s8 = inlined_call_operand.vmem [shape: bf16[2,32,128], index: 8, kind: input, shape index: {}]
  %s9 = inlined_call_operand.vmem [shape: f32[2,1,128], index: 9, kind: input, shape index: {}]
  %s10 = inlined_call_operand.vmem [shape: bf16[2,128,32], index: 10, kind: input, shape index: {}]
  %s11 = inlined_call_operand.vmem [shape: f32[2,1,32], index: 11, kind: input, shape index: {}]
  %s12 = inlined_call_operand.vmem [shape: f32[2,1,32], index: 12, kind: input, shape index: {}]
  %s13 = inlined_call_operand.vmem [shape: f32[2,1,32], index: 13, kind: input, shape index: {}]
  %s14 = inlined_call_operand.vmem [shape: f32[2,1,32], index: 14, kind: input, shape index: {}]
  %s15 = inlined_call_operand.vmem [shape: f32[2,1,32], index: 15, kind: input, shape index: {}]
  %s16 = inlined_call_operand.vmem [shape: f32[2,24,32], index: 16, kind: output, shape index: {0}]
  %s17 = inlined_call_operand.vmem [shape: f32[2,2,2,24,24], index: 17, kind: output, shape index: {1}]
  %s18 = inlined_call_operand.vmem [shape: f32[2,2,24,128], index: 18, kind: output, shape index: {2}]
  %19 = xla_tuple %s16, %s17, %s18
  %s20 = sld [smem:[#allocation0]]
  $region117: #{decision_transformer_forward.2} parent=0
    _
  %s22 = ssub.s32 1, %s20
  %s23 = scalar_select 0, %s22, %s20
  loop: start=0, step=1, limit=6
  $region2: #{decision_transformer_forward.2} parent=0 // loop_pre_header
    _
  $region3: #{decision_transformer_forward.2} parent=0 // loop_header
    %s25 = sphi 0, %s29
    %p26 = scmp.ge.s32.totalorder %s25, 6
    %s32 = sphi 0, %s44
    %s33 = sphi 0, %s40
    %s34 = sphi 0, %s32
    %s35 = sphi 0, %s33
    %s36 = sphi 0, %s34
    %s37 = sphi 0, %s35
    %s47 = sphi 0, %s49
    %s50 = sphi 0, %s47
    %s51 = sphi 0, %s50
    %s67 = sphi 0, %s51
    %s71 = sphi 0, %s71
    %s73 = sphi 0, %s71
    %s74 = sphi 0, %s73
    %s88 = sphi 0, %s74
    %s92 = sphi 0, %s92
    %s94 = sphi 0, %s92
    %s95 = sphi 0, %s94
    %s109 = sphi 0, %s95
    %s113 = sphi 0, %s113
    %s115 = sphi 0, %s113
    %s116 = sphi 0, %s115
    %s130 = sphi 0, %s116
    %s136 = sphi 0, %s138
    %s139 = sphi 0, %s136
    %s140 = sphi 0, %s139
    %s156 = sphi 0, %s140
    %s162 = sphi 0, %s164
    %s165 = sphi 0, %s162
    %s166 = sphi 0, %s165
    %s182 = sphi 0, %s166
    %s188 = sphi 0, %s190
    %s191 = sphi 0, %s188
    %s192 = sphi 0, %s191
    %s208 = sphi 0, %s192
    %s214 = sphi 0, %s216
    %s217 = sphi 0, %s214
    %s218 = sphi 0, %s217
    %s234 = sphi 0, %s218
    %s240 = sphi 0, %s242
    %s243 = sphi 0, %s240
    %s244 = sphi 0, %s243
    %s260 = sphi 0, %s244
    %s266 = sphi 0, %s268
    %s269 = sphi 0, %s266
    %s270 = sphi 0, %s269
    %s286 = sphi 0, %s270
    %s292 = sphi 0, %s294
    %s295 = sphi 0, %s292
    %s296 = sphi 0, %s295
    %s312 = sphi 0, %s296
    %s318 = sphi 0, %s320
    %s321 = sphi 0, %s318
    %s322 = sphi 0, %s321
    %s338 = sphi 0, %s322
    %s344 = sphi 0, %s346
    %s347 = sphi 0, %s344
    %s348 = sphi 0, %s347
    %s364 = sphi 0, %s348
    %s370 = sphi 0, %s372
    %s373 = sphi 0, %s370
    %s374 = sphi 0, %s373
    %s390 = sphi 0, %s374
    %s396 = sphi 0, %s398
    %s399 = sphi 0, %s396
    %s400 = sphi 0, %s399
    %s416 = sphi 0, %s400
    %s422 = sphi 0, %s424
    %s425 = sphi 0, %s422
    %s426 = sphi 0, %s425
    %s442 = sphi 0, %s426
    %s448 = sphi 0, %s450
    %s451 = sphi 0, %s448
    %s452 = sphi 0, %s451
    %s468 = sphi 0, %s452
    %s476 = sphi 0, %s478
    %s479 = sphi 0, %s476
    %s480 = sphi 0, %s479
    %s496 = sphi 0, %s480
    %s504 = sphi 0, %s506
    %s507 = sphi 0, %s504
    %s508 = sphi 0, %s507
    %s524 = sphi 0, %s508
  $region4: #{decision_transformer_forward.2} parent=0 // loop_header_branch
    %28 = sbr.rel (%p26) target = $region8
  $region5: #{decision_transformer_forward.2} parent=0 // loop_body
    %s30 = ssub.s32 %s25, 1
    %s31 = ssub.s32 %s25, 2
    %s38 = sadd.s32 1, %s33
    %p39 = scmp.ge.s32.totalorder %s38, 2
    %s40 = scalar_select %p39, 0, %s38
    %s41 = sadd.s32 1, %s32
    %s42 = scalar_select %p39, %s41, %s32
    %p43 = scmp.ge.s32.totalorder %s42, 2
    %s44 = scalar_select %p43, 0, %s42
    %s45 = ssub.s32 %s32, %s44
    %p46 = scmp.eq.s32.totalorder %s45, 0
    %s48 = sadd.s32 %s47, 1
    %s49 = scalar_select %p46, %s47, %s48
    %p52 = pneg %p46
    %p53 = scmp.eq.s32.totalorder %s25, 3
    %p54 = por %p52, %p53
    %p55 = scmp.ne.s32.totalorder %s47, %s50
    %p56 = scmp.eq.s32.totalorder %s25, 0
    %p57 = por %p55, %p56
    %p58 = scmp.ne.s32.totalorder %s47, %s50
    %p59 = scmp.eq.s32.totalorder %s30, 3
    %p60 = por %p58, %p59
    %p61 = scmp.ne.s32.totalorder %s50, %s51
    %p62 = scmp.eq.s32.totalorder %s30, 0
    %p63 = por %p61, %p62
    %p64 = scmp.ne.s32.totalorder %s50, %s51
    %p65 = scmp.eq.s32.totalorder %s31, 3
    %p66 = por %p64, %p65
    %p68 = scmp.ne.s32.totalorder %s51, %s67
    %p69 = scmp.eq.s32.totalorder %s31, 0
    %p70 = por %p68, %p69
    %s72 = sadd.s32 %s71, 1
    %p75 = scmp.eq.s32.totalorder %s25, 3
    %p76 = scmp.ne.s32.totalorder %s71, %s73
    %p77 = scmp.eq.s32.totalorder %s25, 0
    %p78 = por %p76, %p77
    %p79 = scmp.ne.s32.totalorder %s71, %s73
    %p80 = scmp.eq.s32.totalorder %s30, 3
    %p81 = por %p79, %p80
    %p82 = scmp.ne.s32.totalorder %s73, %s74
    %p83 = scmp.eq.s32.totalorder %s30, 0
    %p84 = por %p82, %p83
    %p85 = scmp.ne.s32.totalorder %s73, %s74
    %p86 = scmp.eq.s32.totalorder %s31, 3
    %p87 = por %p85, %p86
    %p89 = scmp.ne.s32.totalorder %s74, %s88
    %p90 = scmp.eq.s32.totalorder %s31, 0
    %p91 = por %p89, %p90
    %s93 = sadd.s32 %s92, 1
    %p96 = scmp.eq.s32.totalorder %s25, 3
    %p97 = scmp.ne.s32.totalorder %s92, %s94
    %p98 = scmp.eq.s32.totalorder %s25, 0
    %p99 = por %p97, %p98
    %p100 = scmp.ne.s32.totalorder %s92, %s94
    %p101 = scmp.eq.s32.totalorder %s30, 3
    %p102 = por %p100, %p101
    %p103 = scmp.ne.s32.totalorder %s94, %s95
    %p104 = scmp.eq.s32.totalorder %s30, 0
    %p105 = por %p103, %p104
    %p106 = scmp.ne.s32.totalorder %s94, %s95
    %p107 = scmp.eq.s32.totalorder %s31, 3
    %p108 = por %p106, %p107
    %p110 = scmp.ne.s32.totalorder %s95, %s109
    %p111 = scmp.eq.s32.totalorder %s31, 0
    %p112 = por %p110, %p111
    %s114 = sadd.s32 %s113, 1
    %p117 = scmp.eq.s32.totalorder %s25, 3
    %p118 = scmp.ne.s32.totalorder %s113, %s115
    %p119 = scmp.eq.s32.totalorder %s25, 0
    %p120 = por %p118, %p119
    %p121 = scmp.ne.s32.totalorder %s113, %s115
    %p122 = scmp.eq.s32.totalorder %s30, 3
    %p123 = por %p121, %p122
    %p124 = scmp.ne.s32.totalorder %s115, %s116
    %p125 = scmp.eq.s32.totalorder %s30, 0
    %p126 = por %p124, %p125
    %p127 = scmp.ne.s32.totalorder %s115, %s116
    %p128 = scmp.eq.s32.totalorder %s31, 3
    %p129 = por %p127, %p128
    %p131 = scmp.ne.s32.totalorder %s116, %s130
    %p132 = scmp.eq.s32.totalorder %s31, 0
    %p133 = por %p131, %p132
    %s134 = ssub.s32 %s33, %s40
    %p135 = scmp.eq.s32.totalorder %s134, 0
    %s137 = sadd.s32 %s136, 1
    %s138 = scalar_select %p135, %s136, %s137
    %p141 = pneg %p135
    %p142 = scmp.eq.s32.totalorder %s25, 3
    %p143 = por %p141, %p142
    %p144 = scmp.ne.s32.totalorder %s136, %s139
    %p145 = scmp.eq.s32.totalorder %s25, 0
    %p146 = por %p144, %p145
    %p147 = scmp.ne.s32.totalorder %s136, %s139
    %p148 = scmp.eq.s32.totalorder %s30, 3
    %p149 = por %p147, %p148
    %p150 = scmp.ne.s32.totalorder %s139, %s140
    %p151 = scmp.eq.s32.totalorder %s30, 0
    %p152 = por %p150, %p151
    %p153 = scmp.ne.s32.totalorder %s139, %s140
    %p154 = scmp.eq.s32.totalorder %s31, 3
    %p155 = por %p153, %p154
    %p157 = scmp.ne.s32.totalorder %s140, %s156
    %p158 = scmp.eq.s32.totalorder %s31, 0
    %p159 = por %p157, %p158
    %s160 = ssub.s32 %s33, %s40
    %p161 = scmp.eq.s32.totalorder %s160, 0
    %s163 = sadd.s32 %s162, 1
    %s164 = scalar_select %p161, %s162, %s163
    %p167 = pneg %p161
    %p168 = scmp.eq.s32.totalorder %s25, 3
    %p169 = por %p167, %p168
    %p170 = scmp.ne.s32.totalorder %s162, %s165
    %p171 = scmp.eq.s32.totalorder %s25, 0
    %p172 = por %p170, %p171
    %p173 = scmp.ne.s32.totalorder %s162, %s165
    %p174 = scmp.eq.s32.totalorder %s30, 3
    %p175 = por %p173, %p174
    %p176 = scmp.ne.s32.totalorder %s165, %s166
    %p177 = scmp.eq.s32.totalorder %s30, 0
    %p178 = por %p176, %p177
    %p179 = scmp.ne.s32.totalorder %s165, %s166
    %p180 = scmp.eq.s32.totalorder %s31, 3
    %p181 = por %p179, %p180
    %p183 = scmp.ne.s32.totalorder %s166, %s182
    %p184 = scmp.eq.s32.totalorder %s31, 0
    %p185 = por %p183, %p184
    %s186 = ssub.s32 %s33, %s40
    %p187 = scmp.eq.s32.totalorder %s186, 0
    %s189 = sadd.s32 %s188, 1
    %s190 = scalar_select %p187, %s188, %s189
    %p193 = pneg %p187
    %p194 = scmp.eq.s32.totalorder %s25, 3
    %p195 = por %p193, %p194
    %p196 = scmp.ne.s32.totalorder %s188, %s191
    %p197 = scmp.eq.s32.totalorder %s25, 0
    %p198 = por %p196, %p197
    %p199 = scmp.ne.s32.totalorder %s188, %s191
    %p200 = scmp.eq.s32.totalorder %s30, 3
    %p201 = por %p199, %p200
    %p202 = scmp.ne.s32.totalorder %s191, %s192
    %p203 = scmp.eq.s32.totalorder %s30, 0
    %p204 = por %p202, %p203
    %p205 = scmp.ne.s32.totalorder %s191, %s192
    %p206 = scmp.eq.s32.totalorder %s31, 3
    %p207 = por %p205, %p206
    %p209 = scmp.ne.s32.totalorder %s192, %s208
    %p210 = scmp.eq.s32.totalorder %s31, 0
    %p211 = por %p209, %p210
    %s212 = ssub.s32 %s33, %s40
    %p213 = scmp.eq.s32.totalorder %s212, 0
    %s215 = sadd.s32 %s214, 1
    %s216 = scalar_select %p213, %s214, %s215
    %p219 = pneg %p213
    %p220 = scmp.eq.s32.totalorder %s25, 3
    %p221 = por %p219, %p220
    %p222 = scmp.ne.s32.totalorder %s214, %s217
    %p223 = scmp.eq.s32.totalorder %s25, 0
    %p224 = por %p222, %p223
    %p225 = scmp.ne.s32.totalorder %s214, %s217
    %p226 = scmp.eq.s32.totalorder %s30, 3
    %p227 = por %p225, %p226
    %p228 = scmp.ne.s32.totalorder %s217, %s218
    %p229 = scmp.eq.s32.totalorder %s30, 0
    %p230 = por %p228, %p229
    %p231 = scmp.ne.s32.totalorder %s217, %s218
    %p232 = scmp.eq.s32.totalorder %s31, 3
    %p233 = por %p231, %p232
    %p235 = scmp.ne.s32.totalorder %s218, %s234
    %p236 = scmp.eq.s32.totalorder %s31, 0
    %p237 = por %p235, %p236
    %s238 = ssub.s32 %s33, %s40
    %p239 = scmp.eq.s32.totalorder %s238, 0
    %s241 = sadd.s32 %s240, 1
    %s242 = scalar_select %p239, %s240, %s241
    %p245 = pneg %p239
    %p246 = scmp.eq.s32.totalorder %s25, 3
    %p247 = por %p245, %p246
    %p248 = scmp.ne.s32.totalorder %s240, %s243
    %p249 = scmp.eq.s32.totalorder %s25, 0
    %p250 = por %p248, %p249
    %p251 = scmp.ne.s32.totalorder %s240, %s243
    %p252 = scmp.eq.s32.totalorder %s30, 3
    %p253 = por %p251, %p252
    %p254 = scmp.ne.s32.totalorder %s243, %s244
    %p255 = scmp.eq.s32.totalorder %s30, 0
    %p256 = por %p254, %p255
    %p257 = scmp.ne.s32.totalorder %s243, %s244
    %p258 = scmp.eq.s32.totalorder %s31, 3
    %p259 = por %p257, %p258
    %p261 = scmp.ne.s32.totalorder %s244, %s260
    %p262 = scmp.eq.s32.totalorder %s31, 0
    %p263 = por %p261, %p262
    %s264 = ssub.s32 %s33, %s40
    %p265 = scmp.eq.s32.totalorder %s264, 0
    %s267 = sadd.s32 %s266, 1
    %s268 = scalar_select %p265, %s266, %s267
    %p271 = pneg %p265
    %p272 = scmp.eq.s32.totalorder %s25, 3
    %p273 = por %p271, %p272
    %p274 = scmp.ne.s32.totalorder %s266, %s269
    %p275 = scmp.eq.s32.totalorder %s25, 0
    %p276 = por %p274, %p275
    %p277 = scmp.ne.s32.totalorder %s266, %s269
    %p278 = scmp.eq.s32.totalorder %s30, 3
    %p279 = por %p277, %p278
    %p280 = scmp.ne.s32.totalorder %s269, %s270
    %p281 = scmp.eq.s32.totalorder %s30, 0
    %p282 = por %p280, %p281
    %p283 = scmp.ne.s32.totalorder %s269, %s270
    %p284 = scmp.eq.s32.totalorder %s31, 3
    %p285 = por %p283, %p284
    %p287 = scmp.ne.s32.totalorder %s270, %s286
    %p288 = scmp.eq.s32.totalorder %s31, 0
    %p289 = por %p287, %p288
    %s290 = ssub.s32 %s33, %s40
    %p291 = scmp.eq.s32.totalorder %s290, 0
    %s293 = sadd.s32 %s292, 1
    %s294 = scalar_select %p291, %s292, %s293
    %p297 = pneg %p291
    %p298 = scmp.eq.s32.totalorder %s25, 3
    %p299 = por %p297, %p298
    %p300 = scmp.ne.s32.totalorder %s292, %s295
    %p301 = scmp.eq.s32.totalorder %s25, 0
    %p302 = por %p300, %p301
    %p303 = scmp.ne.s32.totalorder %s292, %s295
    %p304 = scmp.eq.s32.totalorder %s30, 3
    %p305 = por %p303, %p304
    %p306 = scmp.ne.s32.totalorder %s295, %s296
    %p307 = scmp.eq.s32.totalorder %s30, 0
    %p308 = por %p306, %p307
    %p309 = scmp.ne.s32.totalorder %s295, %s296
    %p310 = scmp.eq.s32.totalorder %s31, 3
    %p311 = por %p309, %p310
    %p313 = scmp.ne.s32.totalorder %s296, %s312
    %p314 = scmp.eq.s32.totalorder %s31, 0
    %p315 = por %p313, %p314
    %s316 = ssub.s32 %s33, %s40
    %p317 = scmp.eq.s32.totalorder %s316, 0
    %s319 = sadd.s32 %s318, 1
    %s320 = scalar_select %p317, %s318, %s319
    %p323 = pneg %p317
    %p324 = scmp.eq.s32.totalorder %s25, 3
    %p325 = por %p323, %p324
    %p326 = scmp.ne.s32.totalorder %s318, %s321
    %p327 = scmp.eq.s32.totalorder %s25, 0
    %p328 = por %p326, %p327
    %p329 = scmp.ne.s32.totalorder %s318, %s321
    %p330 = scmp.eq.s32.totalorder %s30, 3
    %p331 = por %p329, %p330
    %p332 = scmp.ne.s32.totalorder %s321, %s322
    %p333 = scmp.eq.s32.totalorder %s30, 0
    %p334 = por %p332, %p333
    %p335 = scmp.ne.s32.totalorder %s321, %s322
    %p336 = scmp.eq.s32.totalorder %s31, 3
    %p337 = por %p335, %p336
    %p339 = scmp.ne.s32.totalorder %s322, %s338
    %p340 = scmp.eq.s32.totalorder %s31, 0
    %p341 = por %p339, %p340
    %s342 = ssub.s32 %s33, %s40
    %p343 = scmp.eq.s32.totalorder %s342, 0
    %s345 = sadd.s32 %s344, 1
    %s346 = scalar_select %p343, %s344, %s345
    %p349 = pneg %p343
    %p350 = scmp.eq.s32.totalorder %s25, 3
    %p351 = por %p349, %p350
    %p352 = scmp.ne.s32.totalorder %s344, %s347
    %p353 = scmp.eq.s32.totalorder %s25, 0
    %p354 = por %p352, %p353
    %p355 = scmp.ne.s32.totalorder %s344, %s347
    %p356 = scmp.eq.s32.totalorder %s30, 3
    %p357 = por %p355, %p356
    %p358 = scmp.ne.s32.totalorder %s347, %s348
    %p359 = scmp.eq.s32.totalorder %s30, 0
    %p360 = por %p358, %p359
    %p361 = scmp.ne.s32.totalorder %s347, %s348
    %p362 = scmp.eq.s32.totalorder %s31, 3
    %p363 = por %p361, %p362
    %p365 = scmp.ne.s32.totalorder %s348, %s364
    %p366 = scmp.eq.s32.totalorder %s31, 0
    %p367 = por %p365, %p366
    %s368 = ssub.s32 %s33, %s40
    %p369 = scmp.eq.s32.totalorder %s368, 0
    %s371 = sadd.s32 %s370, 1
    %s372 = scalar_select %p369, %s370, %s371
    %p375 = pneg %p369
    %p376 = scmp.eq.s32.totalorder %s25, 3
    %p377 = por %p375, %p376
    %p378 = scmp.ne.s32.totalorder %s370, %s373
    %p379 = scmp.eq.s32.totalorder %s25, 0
    %p380 = por %p378, %p379
    %p381 = scmp.ne.s32.totalorder %s370, %s373
    %p382 = scmp.eq.s32.totalorder %s30, 3
    %p383 = por %p381, %p382
    %p384 = scmp.ne.s32.totalorder %s373, %s374
    %p385 = scmp.eq.s32.totalorder %s30, 0
    %p386 = por %p384, %p385
    %p387 = scmp.ne.s32.totalorder %s373, %s374
    %p388 = scmp.eq.s32.totalorder %s31, 3
    %p389 = por %p387, %p388
    %p391 = scmp.ne.s32.totalorder %s374, %s390
    %p392 = scmp.eq.s32.totalorder %s31, 0
    %p393 = por %p391, %p392
    %s394 = ssub.s32 %s33, %s40
    %p395 = scmp.eq.s32.totalorder %s394, 0
    %s397 = sadd.s32 %s396, 1
    %s398 = scalar_select %p395, %s396, %s397
    %p401 = pneg %p395
    %p402 = scmp.eq.s32.totalorder %s25, 3
    %p403 = por %p401, %p402
    %p404 = scmp.ne.s32.totalorder %s396, %s399
    %p405 = scmp.eq.s32.totalorder %s25, 0
    %p406 = por %p404, %p405
    %p407 = scmp.ne.s32.totalorder %s396, %s399
    %p408 = scmp.eq.s32.totalorder %s30, 3
    %p409 = por %p407, %p408
    %p410 = scmp.ne.s32.totalorder %s399, %s400
    %p411 = scmp.eq.s32.totalorder %s30, 0
    %p412 = por %p410, %p411
    %p413 = scmp.ne.s32.totalorder %s399, %s400
    %p414 = scmp.eq.s32.totalorder %s31, 3
    %p415 = por %p413, %p414
    %p417 = scmp.ne.s32.totalorder %s400, %s416
    %p418 = scmp.eq.s32.totalorder %s31, 0
    %p419 = por %p417, %p418
    %s420 = ssub.s32 %s33, %s40
    %p421 = scmp.eq.s32.totalorder %s420, 0
    %s423 = sadd.s32 %s422, 1
    %s424 = scalar_select %p421, %s422, %s423
    %p427 = pneg %p421
    %p428 = scmp.eq.s32.totalorder %s25, 3
    %p429 = por %p427, %p428
    %p430 = scmp.ne.s32.totalorder %s422, %s425
    %p431 = scmp.eq.s32.totalorder %s25, 0
    %p432 = por %p430, %p431
    %p433 = scmp.ne.s32.totalorder %s422, %s425
    %p434 = scmp.eq.s32.totalorder %s30, 3
    %p435 = por %p433, %p434
    %p436 = scmp.ne.s32.totalorder %s425, %s426
    %p437 = scmp.eq.s32.totalorder %s30, 0
    %p438 = por %p436, %p437
    %p439 = scmp.ne.s32.totalorder %s425, %s426
    %p440 = scmp.eq.s32.totalorder %s31, 3
    %p441 = por %p439, %p440
    %p443 = scmp.ne.s32.totalorder %s426, %s442
    %p444 = scmp.eq.s32.totalorder %s31, 0
    %p445 = por %p443, %p444
    %s446 = ssub.s32 %s32, %s44
    %p447 = scmp.eq.s32.totalorder %s446, 0
    %s449 = sadd.s32 %s448, 1
    %s450 = scalar_select %p447, %s448, %s449
    %p453 = pneg %p447
    %p454 = scmp.eq.s32.totalorder %s25, 3
    %p455 = por %p453, %p454
    %p456 = scmp.ne.s32.totalorder %s448, %s451
    %p457 = scmp.eq.s32.totalorder %s25, 0
    %p458 = por %p456, %p457
    %p459 = scmp.ne.s32.totalorder %s448, %s451
    %p460 = scmp.eq.s32.totalorder %s30, 3
    %p461 = por %p459, %p460
    %p462 = scmp.ne.s32.totalorder %s451, %s452
    %p463 = scmp.eq.s32.totalorder %s30, 0
    %p464 = por %p462, %p463
    %p465 = scmp.ne.s32.totalorder %s451, %s452
    %p466 = scmp.eq.s32.totalorder %s31, 3
    %p467 = por %p465, %p466
    %p469 = scmp.ne.s32.totalorder %s452, %s468
    %p470 = scmp.eq.s32.totalorder %s31, 0
    %p471 = por %p469, %p470
    %s472 = ssub.s32 %s33, %s40
    %s473 = ssub.s32 %s32, %s44
    %s474 = sor.u32 %s472, %s473
    %p475 = scmp.eq.s32.totalorder %s474, 0
    %s477 = sadd.s32 %s476, 1
    %s478 = scalar_select %p475, %s476, %s477
    %p481 = pneg %p475
    %p482 = scmp.eq.s32.totalorder %s25, 3
    %p483 = por %p481, %p482
    %p484 = scmp.ne.s32.totalorder %s476, %s479
    %p485 = scmp.eq.s32.totalorder %s25, 0
    %p486 = por %p484, %p485
    %p487 = scmp.ne.s32.totalorder %s476, %s479
    %p488 = scmp.eq.s32.totalorder %s30, 3
    %p489 = por %p487, %p488
    %p490 = scmp.ne.s32.totalorder %s479, %s480
    %p491 = scmp.eq.s32.totalorder %s30, 0
    %p492 = por %p490, %p491
    %p493 = scmp.ne.s32.totalorder %s479, %s480
    %p494 = scmp.eq.s32.totalorder %s31, 3
    %p495 = por %p493, %p494
    %p497 = scmp.ne.s32.totalorder %s480, %s496
    %p498 = scmp.eq.s32.totalorder %s31, 0
    %p499 = por %p497, %p498
    %s500 = ssub.s32 %s33, %s40
    %s501 = ssub.s32 %s32, %s44
    %s502 = sor.u32 %s500, %s501
    %p503 = scmp.eq.s32.totalorder %s502, 0
    %s505 = sadd.s32 %s504, 1
    %s506 = scalar_select %p503, %s504, %s505
    %p509 = pneg %p503
    %p510 = scmp.eq.s32.totalorder %s25, 3
    %p511 = por %p509, %p510
    %p512 = scmp.ne.s32.totalorder %s504, %s507
    %p513 = scmp.eq.s32.totalorder %s25, 0
    %p514 = por %p512, %p513
    %p515 = scmp.ne.s32.totalorder %s504, %s507
    %p516 = scmp.eq.s32.totalorder %s30, 3
    %p517 = por %p515, %p516
    %p518 = scmp.ne.s32.totalorder %s507, %s508
    %p519 = scmp.eq.s32.totalorder %s30, 0
    %p520 = por %p518, %p519
    %p521 = scmp.ne.s32.totalorder %s507, %s508
    %p522 = scmp.eq.s32.totalorder %s31, 3
    %p523 = por %p521, %p522
    %p525 = scmp.ne.s32.totalorder %s508, %s524
    %p526 = scmp.eq.s32.totalorder %s31, 0
    %p527 = por %p525, %p526
    %p528 = scmp.le.s32.totalorder 1, %s25
    %p529 = scmp.lt.s32.totalorder %s25, 5
    %p530 = pnand %p528, %p529
    %p531 = pneg %p530
    // Predicated region
    $region9: #{decision_transformer_forward.2} parent=5 // pred_check
      _
    $region10: #{decision_transformer_forward.2} parent=5 // pred_check_branch
      %533 = sbr.rel (%p530) target = $region12
    $region11: #{decision_transformer_forward.2} parent=5 // pred_region
      %s534 = ssub.s32 %s25, 1
      // Predicated region
      $region13: #{decision_transformer_forward.2} parent=11 // pred_check
        %p535 = pneg %p84
      $region14: #{decision_transformer_forward.2} parent=11 // pred_check_branch
        %537 = sbr.rel (%p535) target = $region16
      $region15: #{decision_transformer_forward.2} parent=11 // pred_region
        _
      $region16: #{decision_transformer_forward.2} parent=11 // pred_fallthru
        _
      // Predicated region
      $region17: #{decision_transformer_forward.2} parent=11 // pred_check
        %p538 = pneg %p105
      $region18: #{decision_transformer_forward.2} parent=11 // pred_check_branch
        %540 = sbr.rel (%p538) target = $region20
      $region19: #{decision_transformer_forward.2} parent=11 // pred_region
        _
      $region20: #{decision_transformer_forward.2} parent=11 // pred_fallthru
        _
      // Predicated region
      $region21: #{decision_transformer_forward.2} parent=11 // pred_check
        %p541 = pneg %p126
      $region22: #{decision_transformer_forward.2} parent=11 // pred_check_branch
        %543 = sbr.rel (%p541) target = $region24
      $region23: #{decision_transformer_forward.2} parent=11 // pred_region
        _
      $region24: #{decision_transformer_forward.2} parent=11 // pred_fallthru
        _
    $region12: #{decision_transformer_forward.2} parent=5 // pred_fallthru
      _
    %p544 = scmp.lt.s32.totalorder %s25, 4
    // Predicated region
    $region25: #{decision_transformer_forward.2} parent=5 // pred_check
      %p545 = pneg %p544
    $region26: #{decision_transformer_forward.2} parent=5 // pred_check_branch
      %547 = sbr.rel (%p545) target = $region28
    $region27: #{decision_transformer_forward.2} parent=5 // pred_region
      // Predicated region
      $region29: #{decision_transformer_forward.2} parent=27 // pred_check
        %p548 = pneg %p57
      $region30: #{decision_transformer_forward.2} parent=27 // pred_check_branch
        %550 = sbr.rel (%p548) target = $region32
      $region31: #{decision_transformer_forward.2} parent=27 // pred_region
        %p551 = scmp.lt.s32.totalorder %s32, 1
        %s552 = scalar_select %p551, %s32, 1
        %s553 = smul.addr %s552, 3
        %s554 = smul.addr %s553, 8
        %s555 = scalar_lea.vmem %s0, %s554
      $region32: #{decision_transformer_forward.2} parent=27 // pred_fallthru
        _
      // Predicated region
      $region33: #{decision_transformer_forward.2} parent=27 // pred_check
        %p556 = pneg %p146
      $region34: #{decision_transformer_forward.2} parent=27 // pred_check_branch
        %558 = sbr.rel (%p556) target = $region36
      $region35: #{decision_transformer_forward.2} parent=27 // pred_region
        %p559 = scmp.lt.s32.totalorder %s33, 1
        %s560 = scalar_select %p559, %s33, 1
        %s561 = smul.addr %s560, 4
        %s562 = smul.addr %s561, 4
        %s563 = scalar_lea.vmem %s4, %s562
      $region36: #{decision_transformer_forward.2} parent=27 // pred_fallthru
        _
      // Predicated region
      $region37: #{decision_transformer_forward.2} parent=27 // pred_check
        %p564 = pneg %p172
      $region38: #{decision_transformer_forward.2} parent=27 // pred_check_branch
        %566 = sbr.rel (%p564) target = $region40
      $region39: #{decision_transformer_forward.2} parent=27 // pred_region
        %p567 = scmp.lt.s32.totalorder %s33, 1
        %s568 = scalar_select %p567, %s33, 1
        %s569 = scalar_lea.vmem %s5, %s568
      $region40: #{decision_transformer_forward.2} parent=27 // pred_fallthru
        _
      // Predicated region
      $region41: #{decision_transformer_forward.2} parent=27 // pred_check
        %p570 = pneg %p198
      $region42: #{decision_transformer_forward.2} parent=27 // pred_check_branch
        %572 = sbr.rel (%p570) target = $region44
      $region43: #{decision_transformer_forward.2} parent=27 // pred_region
        %p573 = scmp.lt.s32.totalorder %s33, 1
        %s574 = scalar_select %p573, %s33, 1
        %s575 = smul.addr %s574, 4
        %s576 = smul.addr %s575, 4
        %s577 = scalar_lea.vmem %s6, %s576
      $region44: #{decision_transformer_forward.2} parent=27 // pred_fallthru
        _
      // Predicated region
      $region45: #{decision_transformer_forward.2} parent=27 // pred_check
        %p578 = pneg %p224
      $region46: #{decision_transformer_forward.2} parent=27 // pred_check_branch
        %580 = sbr.rel (%p578) target = $region48
      $region47: #{decision_transformer_forward.2} parent=27 // pred_region
        %p581 = scmp.lt.s32.totalorder %s33, 1
        %s582 = scalar_select %p581, %s33, 1
        %s583 = scalar_lea.vmem %s7, %s582
      $region48: #{decision_transformer_forward.2} parent=27 // pred_fallthru
        _
      // Predicated region
      $region49: #{decision_transformer_forward.2} parent=27 // pred_check
        %p584 = pneg %p250
      $region50: #{decision_transformer_forward.2} parent=27 // pred_check_branch
        %586 = sbr.rel (%p584) target = $region52
      $region51: #{decision_transformer_forward.2} parent=27 // pred_region
        %p587 = scmp.lt.s32.totalorder %s33, 1
        %s588 = scalar_select %p587, %s33, 1
        %s589 = smul.addr %s588, 4
        %s590 = smul.addr %s589, 4
        %s591 = scalar_lea.vmem %s8, %s590
      $region52: #{decision_transformer_forward.2} parent=27 // pred_fallthru
        _
      // Predicated region
      $region53: #{decision_transformer_forward.2} parent=27 // pred_check
        %p592 = pneg %p276
      $region54: #{decision_transformer_forward.2} parent=27 // pred_check_branch
        %594 = sbr.rel (%p592) target = $region56
      $region55: #{decision_transformer_forward.2} parent=27 // pred_region
        %p595 = scmp.lt.s32.totalorder %s33, 1
        %s596 = scalar_select %p595, %s33, 1
        %s597 = scalar_lea.vmem %s9, %s596
      $region56: #{decision_transformer_forward.2} parent=27 // pred_fallthru
        _
      // Predicated region
      $region57: #{decision_transformer_forward.2} parent=27 // pred_check
        %p598 = pneg %p302
      $region58: #{decision_transformer_forward.2} parent=27 // pred_check_branch
        %600 = sbr.rel (%p598) target = $region60
      $region59: #{decision_transformer_forward.2} parent=27 // pred_region
        %p601 = scmp.lt.s32.totalorder %s33, 1
        %s602 = scalar_select %p601, %s33, 1
        %s603 = smul.addr %s602, 16
        %s604 = smul.addr %s603, 4
        %s605 = scalar_lea.vmem %s10, %s604
      $region60: #{decision_transformer_forward.2} parent=27 // pred_fallthru
        _
      // Predicated region
      $region61: #{decision_transformer_forward.2} parent=27 // pred_check
        %p606 = pneg %p328
      $region62: #{decision_transformer_forward.2} parent=27 // pred_check_branch
        %608 = sbr.rel (%p606) target = $region64
      $region63: #{decision_transformer_forward.2} parent=27 // pred_region
        %p609 = scmp.lt.s32.totalorder %s33, 1
        %s610 = scalar_select %p609, %s33, 1
        %s611 = scalar_lea.vmem %s11, %s610
      $region64: #{decision_transformer_forward.2} parent=27 // pred_fallthru
        _
      // Predicated region
      $region65: #{decision_transformer_forward.2} parent=27 // pred_check
        %p612 = pneg %p354
      $region66: #{decision_transformer_forward.2} parent=27 // pred_check_branch
        %614 = sbr.rel (%p612) target = $region68
      $region67: #{decision_transformer_forward.2} parent=27 // pred_region
        %p615 = scmp.lt.s32.totalorder %s33, 1
        %s616 = scalar_select %p615, %s33, 1
        %s617 = scalar_lea.vmem %s12, %s616
      $region68: #{decision_transformer_forward.2} parent=27 // pred_fallthru
        _
      // Predicated region
      $region69: #{decision_transformer_forward.2} parent=27 // pred_check
        %p618 = pneg %p380
      $region70: #{decision_transformer_forward.2} parent=27 // pred_check_branch
        %620 = sbr.rel (%p618) target = $region72
      $region71: #{decision_transformer_forward.2} parent=27 // pred_region
        %p621 = scmp.lt.s32.totalorder %s33, 1
        %s622 = scalar_select %p621, %s33, 1
        %s623 = scalar_lea.vmem %s13, %s622
      $region72: #{decision_transformer_forward.2} parent=27 // pred_fallthru
        _
      // Predicated region
      $region73: #{decision_transformer_forward.2} parent=27 // pred_check
        %p624 = pneg %p406
      $region74: #{decision_transformer_forward.2} parent=27 // pred_check_branch
        %626 = sbr.rel (%p624) target = $region76
      $region75: #{decision_transformer_forward.2} parent=27 // pred_region
        %p627 = scmp.lt.s32.totalorder %s33, 1
        %s628 = scalar_select %p627, %s33, 1
        %s629 = scalar_lea.vmem %s14, %s628
      $region76: #{decision_transformer_forward.2} parent=27 // pred_fallthru
        _
      // Predicated region
      $region77: #{decision_transformer_forward.2} parent=27 // pred_check
        %p630 = pneg %p432
      $region78: #{decision_transformer_forward.2} parent=27 // pred_check_branch
        %632 = sbr.rel (%p630) target = $region80
      $region79: #{decision_transformer_forward.2} parent=27 // pred_region
        %p633 = scmp.lt.s32.totalorder %s33, 1
        %s634 = scalar_select %p633, %s33, 1
        %s635 = scalar_lea.vmem %s15, %s634
      $region80: #{decision_transformer_forward.2} parent=27 // pred_fallthru
        _
    $region28: #{decision_transformer_forward.2} parent=5 // pred_fallthru
      _
    %p636 = scmp.le.s32.totalorder 1, %s25
    %p637 = scmp.lt.s32.totalorder %s25, 5
    %p638 = pnand %p636, %p637
    %p639 = pneg %p638
    // Predicated region
    $region81: #{decision_transformer_forward.2} parent=5 // pred_check
      _
    $region82: #{decision_transformer_forward.2} parent=5 // pred_check_branch
      %641 = sbr.rel (%p638) target = $region84
    $region83: #{decision_transformer_forward.2} parent=5 // pred_region
      %s642 = ssub.s32 %s25, 1
      %p643 = scmp.lt.s32.totalorder %s34, 1
      %s644 = scalar_select %p643, %s34, 1
      %s645 = smul.addr %s644, 3
      %s646 = smul.addr %s645, 8
      %s647 = scalar_lea.vmem %s0, %s646
      %p648 = pneg %p63
      %p649 = pneg %p60
      %p650 = pneg %p84
      %p651 = pneg %p81
      %p652 = pneg %p105
      %p653 = pneg %p102
      %p654 = pneg %p126
      %p655 = pneg %p123
      %p656 = scmp.lt.s32.totalorder %s35, 1
      %s657 = scalar_select %p656, %s35, 1
      %s658 = smul.addr %s657, 4
      %s659 = smul.addr %s658, 4
      %s660 = scalar_lea.vmem %s4, %s659
      %p661 = pneg %p152
      %p662 = pneg %p149
      %p663 = scmp.lt.s32.totalorder %s35, 1
      %s664 = scalar_select %p663, %s35, 1
      %s665 = scalar_lea.vmem %s5, %s664
      %p666 = pneg %p178
      %p667 = pneg %p175
      %p668 = scmp.lt.s32.totalorder %s35, 1
      %s669 = scalar_select %p668, %s35, 1
      %s670 = smul.addr %s669, 4
      %s671 = smul.addr %s670, 4
      %s672 = scalar_lea.vmem %s6, %s671
      %p673 = pneg %p204
      %p674 = pneg %p201
      %p675 = scmp.lt.s32.totalorder %s35, 1
      %s676 = scalar_select %p675, %s35, 1
      %s677 = scalar_lea.vmem %s7, %s676
      %p678 = pneg %p230
      %p679 = pneg %p227
      %p680 = scmp.lt.s32.totalorder %s35, 1
      %s681 = scalar_select %p680, %s35, 1
      %s682 = smul.addr %s681, 4
      %s683 = smul.addr %s682, 4
      %s684 = scalar_lea.vmem %s8, %s683
      %p685 = pneg %p256
      %p686 = pneg %p253
      %p687 = scmp.lt.s32.totalorder %s35, 1
      %s688 = scalar_select %p687, %s35, 1
      %s689 = scalar_lea.vmem %s9, %s688
      %p690 = pneg %p282
      %p691 = pneg %p279
      %p692 = scmp.lt.s32.totalorder %s35, 1
      %s693 = scalar_select %p692, %s35, 1
      %s694 = smul.addr %s693, 16
      %s695 = smul.addr %s694, 4
      %s696 = scalar_lea.vmem %s10, %s695
      %p697 = pneg %p308
      %p698 = pneg %p305
      %p699 = scmp.lt.s32.totalorder %s35, 1
      %s700 = scalar_select %p699, %s35, 1
      %s701 = scalar_lea.vmem %s11, %s700
      %p702 = pneg %p334
      %p703 = pneg %p331
      %p704 = scmp.lt.s32.totalorder %s35, 1
      %s705 = scalar_select %p704, %s35, 1
      %s706 = scalar_lea.vmem %s12, %s705
      %p707 = pneg %p360
      %p708 = pneg %p357
      %p709 = scmp.lt.s32.totalorder %s35, 1
      %s710 = scalar_select %p709, %s35, 1
      %s711 = scalar_lea.vmem %s13, %s710
      %p712 = pneg %p386
      %p713 = pneg %p383
      %p714 = scmp.lt.s32.totalorder %s35, 1
      %s715 = scalar_select %p714, %s35, 1
      %s716 = scalar_lea.vmem %s14, %s715
      %p717 = pneg %p412
      %p718 = pneg %p409
      %p719 = scmp.lt.s32.totalorder %s35, 1
      %s720 = scalar_select %p719, %s35, 1
      %s721 = scalar_lea.vmem %s15, %s720
      %p722 = pneg %p438
      %p723 = pneg %p435
      %p724 = pneg %p464
      %p725 = pneg %p461
      %p726 = scmp.lt.s32.totalorder %s34, 1
      %s727 = scalar_select %p726, %s34, 1
      %s728 = smul.addr %s727, 3
      %s729 = smul.addr %s728, 8
      %s730 = scalar_lea.vmem %s16, %s729
      %p731 = pneg %p492
      %p732 = pneg %p489
      %p733 = scmp.lt.s32.totalorder %s35, 1
      %s734 = scalar_select %p733, %s35, 1
      %p735 = scmp.lt.s32.totalorder %s34, 1
      %s736 = scalar_select %p735, %s34, 1
      %s737 = smul.addr %s736, 6
      %s738 = smul.addr %s734, 12
      %s739 = sadd.s32 %s737, %s738
      %s740 = smul.addr %s739, 8
      %s741 = scalar_lea.vmem %s17, %s740
      %p742 = pneg %p520
      %p743 = pneg %p517
      %p744 = scmp.lt.s32.totalorder %s35, 1
      %s745 = scalar_select %p744, %s35, 1
      %p746 = scmp.lt.s32.totalorder %s34, 1
      %s747 = scalar_select %p746, %s34, 1
      %s748 = smul.addr %s747, 3
      %s749 = smul.addr %s745, 6
      %s750 = sadd.s32 %s748, %s749
      %s751 = smul.addr %s750, 8
      %s752 = scalar_lea.vmem %s18, %s751
      %p753 = scmp.lt.s32.totalorder %s34, 1
      %s754 = scalar_select %p753, %s34, 1
      %s755 = smul.addr %s754, 3
      %s756 = smul.addr %s755, 8
      %s757 = scalar_lea.vmem %s0, %s756
      %p758 = scmp.lt.s32.totalorder %s35, 1
      %s759 = scalar_select %p758, %s35, 1
      %s760 = smul.addr %s759, 4
      %s761 = smul.addr %s760, 4
      %s762 = scalar_lea.vmem %s4, %s761
      %p763 = scmp.lt.s32.totalorder %s35, 1
      %s764 = scalar_select %p763, %s35, 1
      %s765 = scalar_lea.vmem %s5, %s764
      %p766 = scmp.lt.s32.totalorder %s35, 1
      %s767 = scalar_select %p766, %s35, 1
      %s768 = smul.addr %s767, 4
      %s769 = smul.addr %s768, 4
      %s770 = scalar_lea.vmem %s6, %s769
      %p771 = scmp.lt.s32.totalorder %s35, 1
      %s772 = scalar_select %p771, %s35, 1
      %s773 = scalar_lea.vmem %s7, %s772
      %p774 = scmp.lt.s32.totalorder %s35, 1
      %s775 = scalar_select %p774, %s35, 1
      %s776 = smul.addr %s775, 4
      %s777 = smul.addr %s776, 4
      %s778 = scalar_lea.vmem %s8, %s777
      %p779 = scmp.lt.s32.totalorder %s35, 1
      %s780 = scalar_select %p779, %s35, 1
      %s781 = scalar_lea.vmem %s9, %s780
      %p782 = scmp.lt.s32.totalorder %s35, 1
      %s783 = scalar_select %p782, %s35, 1
      %s784 = smul.addr %s783, 16
      %s785 = smul.addr %s784, 4
      %s786 = scalar_lea.vmem %s10, %s785
      %p787 = scmp.lt.s32.totalorder %s35, 1
      %s788 = scalar_select %p787, %s35, 1
      %s789 = scalar_lea.vmem %s11, %s788
      %p790 = scmp.lt.s32.totalorder %s35, 1
      %s791 = scalar_select %p790, %s35, 1
      %s792 = scalar_lea.vmem %s12, %s791
      %p793 = scmp.lt.s32.totalorder %s35, 1
      %s794 = scalar_select %p793, %s35, 1
      %s795 = scalar_lea.vmem %s13, %s794
      %p796 = scmp.lt.s32.totalorder %s35, 1
      %s797 = scalar_select %p796, %s35, 1
      %s798 = scalar_lea.vmem %s14, %s797
      %p799 = scmp.lt.s32.totalorder %s35, 1
      %s800 = scalar_select %p799, %s35, 1
      %s801 = scalar_lea.vmem %s15, %s800
      %p802 = scmp.lt.s32.totalorder %s34, 1
      %s803 = scalar_select %p802, %s34, 1
      %s804 = smul.addr %s803, 3
      %s805 = smul.addr %s804, 8
      %s806 = scalar_lea.vmem %s16, %s805
      %p807 = scmp.lt.s32.totalorder %s35, 1
      %s808 = scalar_select %p807, %s35, 1
      %p809 = scmp.lt.s32.totalorder %s34, 1
      %s810 = scalar_select %p809, %s34, 1
      %s811 = smul.addr %s810, 6
      %s812 = smul.addr %s808, 12
      %s813 = sadd.s32 %s811, %s812
      %s814 = smul.addr %s813, 8
      %s815 = scalar_lea.vmem %s17, %s814
      %p816 = scmp.lt.s32.totalorder %s35, 1
      %s817 = scalar_select %p816, %s35, 1
      %p818 = scmp.lt.s32.totalorder %s34, 1
      %s819 = scalar_select %p818, %s34, 1
      %s820 = smul.addr %s819, 3
      %s821 = smul.addr %s817, 6
      %s822 = sadd.s32 %s820, %s821
      %s823 = smul.addr %s822, 8
      %s824 = scalar_lea.vmem %s18, %s823
      %p826 = scmp.eq.s32.totalorder %s35, 0
      // Predicated region
      $region85: #{decision_transformer_forward.2} parent=83 // pred_check
        %p827 = pneg %p826
      $region86: #{decision_transformer_forward.2} parent=83 // pred_check_branch
        %829 = sbr.rel (%p827) target = $region88
      $region87: #{decision_transformer_forward.2} parent=83 // pred_region
        %v830 = vld [vmem:[%s757] sm:$0xff]
        %v831 = vld [vmem:[%s757 + $0x8] sm:$0xff]
        %v832 = vld [vmem:[%s757 + $0x10] sm:$0xff]
        %v833 = vld [vmem:[%s2] sm:$0x1]
        %v834 = vld [vmem:[%s3] sm:$0x1]
        %vm835 = vcmask 261120
        %v836 = vsel %vm835, %v830, 0.0
        %837 = vadd.xlane.f32.xlu0 %v836
        %v838 = vpop.xlane.xlu0 %837
        %v839 = vsel %vm835, %v831, 0.0
        %840 = vadd.xlane.f32.xlu0 %v839
        %v841 = vpop.xlane.xlu0 %840
        %v842 = vsel %vm835, %v832, 0.0
        %843 = vadd.xlane.f32.xlu0 %v842
        %v844 = vpop.xlane.xlu0 %843
        %v845 = vrcp.pop 32.0
        %v846 = vmul.f32 %v838, %v845
        %v847 = vmul.f32 %v841, %v845
        %v848 = vmul.f32 %v844, %v845
        %v849 = vsub.f32 %v830, %v846
        %v850 = vsub.f32 %v831, %v847
        %v851 = vsub.f32 %v832, %v848
        %v852 = vmul.f32 %v849, %v849
        %v853 = vmul.f32 %v850, %v850
        %v854 = vmul.f32 %v851, %v851
        %v855 = vsel %vm835, %v852, 0.0
        %856 = vadd.xlane.f32.xlu0 %v855
        %v857 = vpop.xlane.xlu0 %856
        %v858 = vsel %vm835, %v853, 0.0
        %859 = vadd.xlane.f32.xlu0 %v858
        %v860 = vpop.xlane.xlu0 %859
        %v861 = vsel %vm835, %v854, 0.0
        %862 = vadd.xlane.f32.xlu0 %v861
        %v863 = vpop.xlane.xlu0 %862
        %v864 = vmul.f32 %v857, %v845
        %v865 = vmul.f32 %v860, %v845
        %v866 = vmul.f32 %v863, %v845
        %v867 = vadd.f32 %v864, 1e-05
        %v868 = vadd.f32 %v865, 1e-05
        %v869 = vadd.f32 %v866, 1e-05
        %v870 = vrsqrt.pop %v867
        %v871 = vrsqrt.pop %v868
        %v872 = vrsqrt.pop %v869
        %v873 = vmul.f32 %v849, %v870
        %v874 = vmul.f32 %v850, %v871
        %v875 = vmul.f32 %v851, %v872
        %v877 = vlaneseq
        %v878 = vshrl.u32 %v877, 7
        %v879 = vsub.s32 0, %v878
        %v880 = vrot.slane %v833, %v879
        %v882 = vmul.f32 %v873, %v880
        %v883 = vmul.f32 %v874, %v880
        %v884 = vmul.f32 %v875, %v880
        %v886 = vlaneseq
        %v887 = vshrl.u32 %v886, 7
        %v888 = vsub.s32 0, %v887
        %v889 = vrot.slane %v834, %v888
        %v891 = vadd.f32 %v882, %v889
        %v892 = vadd.f32 %v883, %v889
        %v893 = vadd.f32 %v884, %v889
        %894 = vst.msk [vmem:[#allocation2] sm:$0xff] %vm835, %v891
        %895 = vst.msk [vmem:[#allocation2 + $0x8] sm:$0xff] %vm835, %v892
        %896 = vst.msk [vmem:[#allocation2 + $0x10] sm:$0xff] %vm835, %v893
      $region88: #{decision_transformer_forward.2} parent=83 // pred_fallthru
        _
      %v897 = vld [vmem:[#allocation2] sm:$0xff]
      %v898 = vld [vmem:[#allocation2 + $0x8] sm:$0xff]
      %v899 = vld [vmem:[#allocation2 + $0x10] sm:$0xff]
      %v900 = vld [vmem:[%s1] sm:$0xff]
      %v901 = vld [vmem:[%s1 + $0x8] sm:$0xff]
      %v902 = vld [vmem:[%s1 + $0x10] sm:$0xff]
      %v903 = vld [vmem:[%s762] sm:$0xf]
      %v904 = vld [vmem:[%s762 + $0x4] sm:$0xf]
      %v905 = vld [vmem:[%s762 + $0x8] sm:$0xf]
      %v906 = vld [vmem:[%s762 + $0xc] sm:$0xf]
      %v907 = vpack.c.bf16 %v898, %v897
      %v908 = vpack.c.bf16 %v899, %v899
      %v909 = vld [vmem:[%s765] sm:$0x1]
      %v911 = vlaneseq
      %v912 = vshrl.u32 %v911, 7
      %v913 = vsub.s32 0, %v912
      %v914 = vrot.slane %v909, %v913
      %v920 = vunpack.c.l.b16 %v903
      %v921 = vunpack.c.l.b16 %v904
      %v922 = vunpack.c.l.b16 %v905
      %v923 = vunpack.c.l.b16 %v906
      %v924 = vpack.c.b16 %v921, %v920
      %v925 = vpack.c.b16 %v923, %v922
      %vm928 = vcmask 261120
      %v930 = vsel %vm928, %v907, 0
      %v933 = vsel %vm928, %v908, 0
      %935 = vmatprep.subr.bf16.mxu0 0
      %936 = vmatpush1.bf16.msra.mxu0 0
      %937 = vmatprep.subr.bf16.mxu0 0
      %938 = vmatpush1.bf16.msra.mxu0 0
      %939 = vmatprep.subr.bf16.mxu0 0
      %940 = vmatpush1.bf16.msra.mxu0 0
      %941 = vmatprep.subr.bf16.mxu0 0
      %942 = vmatpush1.bf16.msra.mxu0 0
      %943 = vmatprep.subr.bf16.mxu0 0
      %944 = vmatpush1.bf16.msra.mxu0 0
      %945 = vmatprep.subr.bf16.mxu0 0
      %946 = vmatpush1.bf16.msra.mxu0 0
      %947 = vmatprep.subr.bf16.mxu0 0
      %948 = vmatpush1.bf16.msra.mxu0 %v925
      %949 = vmatprep.subr.bf16.mxu0 0
      %950 = vmatpush1.bf16.msra.mxu0 %v924
      %951 = vmatprep.subr.bf16.mxu0 0
      %952 = vmatpush2.bf16.msra.mxu0 0
      %953 = vmatprep.subr.bf16.mxu0 0
      %954 = vmatpush2.bf16.msra.mxu0 0
      %955 = vmatprep.subr.bf16.mxu0 0
      %956 = vmatpush2.bf16.msra.mxu0 0
      %957 = vmatprep.subr.bf16.mxu0 0
      %958 = vmatpush2.bf16.msra.mxu0 0
      %959 = vmatprep.subr.bf16.mxu0 0
      %960 = vmatpush2.bf16.msra.mxu0 0
      %961 = vmatprep.subr.bf16.mxu0 0
      %962 = vmatpush2.bf16.msra.mxu0 0
      %963 = vmatprep.subr.bf16.mxu0 0
      %964 = vmatpush2.bf16.msra.mxu0 0
      %965 = vmatprep.subr.bf16.mxu0 0
      %966 = vmatpush2.bf16.msra.mxu0 0
      %967 = vmatprep.mubr.bf16.mxu0 0
      %968 = vmatmul.mubr.bf16.gmra.mxu0 %v930
      %v969 = vpop.f32.mrf.mxu0
      %v970 = vadd.f32 %v914, %v969
      %v971 = vpop.f32.mrf.mxu0
      %v972 = vpop.f32.mrf.mxu0
      %v973 = vadd.f32 %v914, %v972
      %v974 = vpop.f32.mrf.mxu0
      %975 = vmatprep.mubr.bf16.mxu0 0
      %976 = vmatmul.mubr.bf16.gmra.mxu0 %v933
      %v977 = vpop.f32.mrf.mxu0
      %v978 = vadd.f32 %v914, %v977
      %v979 = vpop.f32.mrf.mxu0
      %v980 = vpop.f32.mrf.mxu0
      %v981 = vpop.f32.mrf.mxu0
      %982 = vdwg.mxu0
      %986 = vrot.lane.b32.xlu0 %v970, 96
      %v987 = vpop.permute.xlu0 %986
      %988 = vrot.lane.b32.xlu0 %v973, 96
      %v989 = vpop.permute.xlu0 %988
      %990 = vrot.lane.b32.xlu0 %v978, 96
      %v991 = vpop.permute.xlu0 %990
      %vm992 = vcmask 130048
      %v993 = vsel %vm992, %v970, 0
      %v995 = vsel %vm992, %v973, 0
      %v997 = vsel %vm992, %v978, 0
      %v999 = vsel %vm992, %v987, 0
      %v1001 = vsel %vm992, %v989, 0
      %v1003 = vsel %vm992, %v991, 0
      %1005 = vmatprep.subr.mxu0 0.0
      %1006 = vmatpush1.xpose.msra.mxu0 0.0
      %1007 = vmatprep.subr.mxu0 0.0
      %1008 = vmatpush1.xpose.msra.mxu0 0.0
      %1009 = vmatprep.subr.mxu0 0.0
      %1010 = vmatpush1.xpose.msra.mxu0 0.0
      %1011 = vmatprep.subr.mxu0 0.0
      %1012 = vmatpush1.xpose.msra.mxu0 0.0
      %1013 = vmatprep.subr.mxu0 0.0
      %1014 = vmatpush1.xpose.msra.mxu0 0.0
      %1015 = vmatprep.subr.mxu0 0.0
      %1016 = vmatpush1.xpose.msra.mxu0 0.0
      %1017 = vmatprep.subr.mxu0 0.0
      %1018 = vmatpush1.xpose.msra.mxu0 0.0
      %1019 = vmatprep.subr.mxu0 0.0
      %1020 = vmatpush1.xpose.msra.mxu0 0.0
      %1021 = vmatprep.subr.mxu0 0.0
      %1022 = vmatpush1.xpose.msra.mxu0 0.0
      %1023 = vmatprep.subr.mxu0 0.0
      %1024 = vmatpush1.xpose.msra.mxu0 0.0
      %1025 = vmatprep.subr.mxu0 0.0
      %1026 = vmatpush1.xpose.msra.mxu0 0.0
      %1027 = vmatprep.subr.mxu0 0.0
      %1028 = vmatpush1.xpose.msra.mxu0 0.0
      %1029 = vmatprep.subr.mxu0 0.0
      %1030 = vmatpush1.xpose.msra.mxu0 0.0
      %1031 = vmatprep.subr.mxu0 0.0
      %1032 = vmatpush1.xpose.msra.mxu0 %v1003
      %1033 = vmatprep.subr.mxu0 0.0
      %1034 = vmatpush1.xpose.msra.mxu0 %v1001
      %1035 = vmatprep.subr.mxu0 0.0
      %1036 = vmatpush1.xpose.msra.mxu0 %v999
      %1037 = vmatprep.subr.mxu0 0.0
      %1038 = vmatpush2.xpose.msra.mxu0 0.0
      %1039 = vmatprep.subr.mxu0 0.0
      %1040 = vmatpush2.xpose.msra.mxu0 0.0
      %1041 = vmatprep.subr.mxu0 0.0
      %1042 = vmatpush2.xpose.msra.mxu0 0.0
      %1043 = vmatprep.subr.mxu0 0.0
      %1044 = vmatpush2.xpose.msra.mxu0 0.0
      %1045 = vmatprep.subr.mxu0 0.0
      %1046 = vmatpush2.xpose.msra.mxu0 0.0
      %1047 = vmatprep.subr.mxu0 0.0
      %1048 = vmatpush2.xpose.msra.mxu0 0.0
      %1049 = vmatprep.subr.mxu0 0.0
      %1050 = vmatpush2.xpose.msra.mxu0 0.0
      %1051 = vmatprep.subr.mxu0 0.0
      %1052 = vmatpush2.xpose.msra.mxu0 0.0
      %1053 = vmatprep.subr.mxu0 0.0
      %1054 = vmatpush2.xpose.msra.mxu0 0.0
      %1055 = vmatprep.subr.mxu0 0.0
      %1056 = vmatpush2.xpose.msra.mxu0 0.0
      %1057 = vmatprep.subr.mxu0 0.0
      %1058 = vmatpush2.xpose.msra.mxu0 0.0
      %1059 = vmatprep.subr.mxu0 0.0
      %1060 = vmatpush2.xpose.msra.mxu0 0.0
      %1061 = vmatprep.subr.mxu0 0.0
      %1062 = vmatpush2.xpose.msra.mxu0 0.0
      %1063 = vmatprep.subr.mxu0 0.0
      %1064 = vmatpush2.xpose.msra.mxu0 0.0
      %1065 = vmatprep.subr.mxu0 0.0
      %1066 = vmatpush2.xpose.msra.mxu0 0.0
      %1067 = vmatprep.subr.mxu0 0.0
      %1068 = vmatpush2.xpose.msra.mxu0 0.0
      %1069 = vmatprep.mubr.f32.mxu0 0.0
      %1070 = vmatmul.mubr.f32.gmra.mxu0 %v993
      %v1071 = vpop.f32.mrf.mxu0
      %v1072 = vadd.f32 0.0, %v1071
      %v1073 = vpop.f32.mrf.mxu0
      %1074 = vmatprep.mubr.f32.mxu0 0.0
      %1075 = vmatmul.mubr.f32.gmra.mxu0 %v995
      %v1076 = vpop.f32.mrf.mxu0
      %v1077 = vadd.f32 0.0, %v1076
      %v1078 = vpop.f32.mrf.mxu0
      %1079 = vmatprep.mubr.f32.mxu0 0.0
      %1080 = vmatmul.mubr.f32.gmra.mxu0 %v997
      %v1081 = vpop.f32.mrf.mxu0
      %v1082 = vadd.f32 0.0, %v1081
      %v1083 = vpop.f32.mrf.mxu0
      %1084 = vdwg.mxu0
      %v1085 = vmul.f32 %v1072, 0.25
      %v1086 = vmul.f32 %v1077, 0.25
      %v1087 = vmul.f32 %v1082, 0.25
      %v1088 = vadd.f32 %v1085, %v900
      %v1089 = vadd.f32 %v1086, %v901
      %v1090 = vadd.f32 %v1087, %v902
      %vm1091 = vcmask 195584
      %v1092 = vsel %vm1091, %v1088, -inf
      %1093 = vmax.xlane.f32.xlu0 %v1092
      %v1094 = vpop.xlane.xlu0 %1093
      %v1095 = vsel %vm1091, %v1089, -inf
      %1096 = vmax.xlane.f32.xlu0 %v1095
      %v1097 = vpop.xlane.xlu0 %1096
      %v1098 = vsel %vm1091, %v1090, -inf
      %1099 = vmax.xlane.f32.xlu0 %v1098
      %v1100 = vpop.xlane.xlu0 %1099
      %v1101 = vsub.f32 %v1088, %v1094
      %v1102 = vsub.f32 %v1089, %v1097
      %v1103 = vsub.f32 %v1090, %v1100
      %v1104 = vmul.f32 %v1101, 1.442695
      %v1105 = vpow.pop %v1104
      %v1106 = vmul.f32 %v1102, 1.442695
      %v1107 = vpow.pop %v1106
      %v1108 = vmul.f32 %v1103, 1.442695
      %v1109 = vpow.pop %v1108
      %v1110 = vsel %vm1091, %v1105, 0.0
      %1111 = vadd.xlane.f32.xlu0 %v1110
      %v1112 = vpop.xlane.xlu0 %1111
      %v1113 = vsel %vm1091, %v1107, 0.0
      %1114 = vadd.xlane.f32.xlu0 %v1113
      %v1115 = vpop.xlane.xlu0 %1114
      %v1116 = vsel %vm1091, %v1109, 0.0
      %1117 = vadd.xlane.f32.xlu0 %v1116
      %v1118 = vpop.xlane.xlu0 %1117
      %v1119 = vrcp.pop %v1112
      %v1120 = vrcp.pop %v1115
      %v1121 = vrcp.pop %v1118
      %v1122 = vmul.f32 %v1105, %v1119
      %v1123 = vmul.f32 %v1107, %v1120
      %v1124 = vmul.f32 %v1109, %v1121
      %1125 = vst.msk [vmem:[%s815] sm:$0xff] %vm1091, %v1122
      %1126 = vst.msk [vmem:[%s815 + $0x8] sm:$0xff] %vm1091, %v1123
      %1127 = vst.msk [vmem:[%s815 + $0x10] sm:$0xff] %vm1091, %v1124
      %1128 = vrot.lane.b32.xlu0 %v970, 64
      %v1129 = vpop.permute.xlu0 %1128
      %1130 = vrot.lane.b32.xlu0 %v973, 64
      %v1131 = vpop.permute.xlu0 %1130
      %1132 = vrot.lane.b32.xlu0 %v978, 64
      %v1133 = vpop.permute.xlu0 %1132
      %v1138 = vsel %vm1091, %v1122, 0
      %v1141 = vsel %vm1091, %v1123, 0
      %v1144 = vsel %vm1091, %v1124, 0
      %1146 = vmatprep.subr.mxu0 0.0
      %1147 = vmatpush1.msra.mxu0 0.0
      %1148 = vmatprep.subr.mxu0 0.0
      %1149 = vmatpush1.msra.mxu0 0.0
      %1150 = vmatprep.subr.mxu0 0.0
      %1151 = vmatpush1.msra.mxu0 0.0
      %1152 = vmatprep.subr.mxu0 0.0
      %1153 = vmatpush1.msra.mxu0 0.0
      %1154 = vmatprep.subr.mxu0 0.0
      %1155 = vmatpush1.msra.mxu0 0.0
      %1156 = vmatprep.subr.mxu0 0.0
      %1157 = vmatpush1.msra.mxu0 0.0
      %1158 = vmatprep.subr.mxu0 0.0
      %1159 = vmatpush1.msra.mxu0 0.0
      %1160 = vmatprep.subr.mxu0 0.0
      %1161 = vmatpush1.msra.mxu0 0.0
      %1162 = vmatprep.subr.mxu0 0.0
      %1163 = vmatpush1.msra.mxu0 0.0
      %1164 = vmatprep.subr.mxu0 0.0
      %1165 = vmatpush1.msra.mxu0 0.0
      %1166 = vmatprep.subr.mxu0 0.0
      %1167 = vmatpush1.msra.mxu0 0.0
      %1168 = vmatprep.subr.mxu0 0.0
      %1169 = vmatpush1.msra.mxu0 0.0
      %1170 = vmatprep.subr.mxu0 0.0
      %1171 = vmatpush1.msra.mxu0 0.0
      %1172 = vmatprep.subr.mxu0 0.0
      %1173 = vmatpush1.msra.mxu0 %v1133
      %1174 = vmatprep.subr.mxu0 0.0
      %1175 = vmatpush1.msra.mxu0 %v1131
      %1176 = vmatprep.subr.mxu0 0.0
      %1177 = vmatpush1.msra.mxu0 %v1129
      %1178 = vmatprep.subr.mxu0 0.0
      %1179 = vmatpush2.msra.mxu0 0.0
      %1180 = vmatprep.subr.mxu0 0.0
      %1181 = vmatpush2.msra.mxu0 0.0
      %1182 = vmatprep.subr.mxu0 0.0
      %1183 = vmatpush2.msra.mxu0 0.0
      %1184 = vmatprep.subr.mxu0 0.0
      %1185 = vmatpush2.msra.mxu0 0.0
      %1186 = vmatprep.subr.mxu0 0.0
      %1187 = vmatpush2.msra.mxu0 0.0
      %1188 = vmatprep.subr.mxu0 0.0
      %1189 = vmatpush2.msra.mxu0 0.0
      %1190 = vmatprep.subr.mxu0 0.0
      %1191 = vmatpush2.msra.mxu0 0.0
      %1192 = vmatprep.subr.mxu0 0.0
      %1193 = vmatpush2.msra.mxu0 0.0
      %1194 = vmatprep.subr.mxu0 0.0
      %1195 = vmatpush2.msra.mxu0 0.0
      %1196 = vmatprep.subr.mxu0 0.0
      %1197 = vmatpush2.msra.mxu0 0.0
      %1198 = vmatprep.subr.mxu0 0.0
      %1199 = vmatpush2.msra.mxu0 0.0
      %1200 = vmatprep.subr.mxu0 0.0
      %1201 = vmatpush2.msra.mxu0 0.0
      %1202 = vmatprep.subr.mxu0 0.0
      %1203 = vmatpush2.msra.mxu0 0.0
      %1204 = vmatprep.subr.mxu0 0.0
      %1205 = vmatpush2.msra.mxu0 0.0
      %1206 = vmatprep.subr.mxu0 0.0
      %1207 = vmatpush2.msra.mxu0 0.0
      %1208 = vmatprep.subr.mxu0 0.0
      %1209 = vmatpush2.msra.mxu0 0.0
      %1210 = vmatprep.mubr.f32.mxu0 0.0
      %1211 = vmatmul.mubr.f32.gmra.mxu0 %v1138
      %v1212 = vpop.f32.mrf.mxu0
      %v1213 = vadd.f32 0.0, %v1212
      %v1214 = vpop.f32.mrf.mxu0
      %1215 = vmatprep.mubr.f32.mxu0 0.0
      %1216 = vmatmul.mubr.f32.gmra.mxu0 %v1141
      %v1217 = vpop.f32.mrf.mxu0
      %v1218 = vadd.f32 0.0, %v1217
      %v1219 = vpop.f32.mrf.mxu0
      %1220 = vmatprep.mubr.f32.mxu0 0.0
      %1221 = vmatmul.mubr.f32.gmra.mxu0 %v1144
      %v1222 = vpop.f32.mrf.mxu0
      %v1223 = vadd.f32 0.0, %v1222
      %v1224 = vpop.f32.mrf.mxu0
      %1225 = vdwg.mxu0
      %v1226 = vld [vmem:[%s770] sm:$0xf]
      %v1227 = vld [vmem:[%s770 + $0x4] sm:$0xf]
      %v1228 = vpack.c.bf16 %v1218, %v1213
      %v1229 = vpack.c.bf16 %v1223, %v1223
      %1230 = vrot.lane.b32.xlu0 %v970, 112
      %v1231 = vpop.permute.xlu0 %1230
      %1232 = vrot.lane.b32.xlu0 %v973, 112
      %v1233 = vpop.permute.xlu0 %1232
      %1234 = vrot.lane.b32.xlu0 %v978, 112
      %v1235 = vpop.permute.xlu0 %1234
      %1236 = vrot.lane.b32.xlu0 %v970, 80
      %v1237 = vpop.permute.xlu0 %1236
      %1238 = vrot.lane.b32.xlu0 %v973, 80
      %v1239 = vpop.permute.xlu0 %1238
      %1240 = vrot.lane.b32.xlu0 %v978, 80
      %v1241 = vpop.permute.xlu0 %1240
      %v1242 = vsel %vm992, %v1231, 0
      %v1244 = vsel %vm992, %v1233, 0
      %v1246 = vsel %vm992, %v1235, 0
      %v1248 = vsel %vm992, %v1237, 0
      %v1250 = vsel %vm992, %v1239, 0
      %v1252 = vsel %vm992, %v1241, 0
      %1254 = vmatprep.subr.mxu0 0.0
      %1255 = vmatpush1.xpose.msra.mxu0 0.0
      %1256 = vmatprep.subr.mxu0 0.0
      %1257 = vmatpush1.xpose.msra.mxu0 0.0
      %1258 = vmatprep.subr.mxu0 0.0
      %1259 = vmatpush1.xpose.msra.mxu0 0.0
      %1260 = vmatprep.subr.mxu0 0.0
      %1261 = vmatpush1.xpose.msra.mxu0 0.0
      %1262 = vmatprep.subr.mxu0 0.0
      %1263 = vmatpush1.xpose.msra.mxu0 0.0
      %1264 = vmatprep.subr.mxu0 0.0
      %1265 = vmatpush1.xpose.msra.mxu0 0.0
      %1266 = vmatprep.subr.mxu0 0.0
      %1267 = vmatpush1.xpose.msra.mxu0 0.0
      %1268 = vmatprep.subr.mxu0 0.0
      %1269 = vmatpush1.xpose.msra.mxu0 0.0
      %1270 = vmatprep.subr.mxu0 0.0
      %1271 = vmatpush1.xpose.msra.mxu0 0.0
      %1272 = vmatprep.subr.mxu0 0.0
      %1273 = vmatpush1.xpose.msra.mxu0 0.0
      %1274 = vmatprep.subr.mxu0 0.0
      %1275 = vmatpush1.xpose.msra.mxu0 0.0
      %1276 = vmatprep.subr.mxu0 0.0
      %1277 = vmatpush1.xpose.msra.mxu0 0.0
      %1278 = vmatprep.subr.mxu0 0.0
      %1279 = vmatpush1.xpose.msra.mxu0 0.0
      %1280 = vmatprep.subr.mxu0 0.0
      %1281 = vmatpush1.xpose.msra.mxu0 %v1252
      %1282 = vmatprep.subr.mxu0 0.0
      %1283 = vmatpush1.xpose.msra.mxu0 %v1250
      %1284 = vmatprep.subr.mxu0 0.0
      %1285 = vmatpush1.xpose.msra.mxu0 %v1248
      %1286 = vmatprep.subr.mxu0 0.0
      %1287 = vmatpush2.xpose.msra.mxu0 0.0
      %1288 = vmatprep.subr.mxu0 0.0
      %1289 = vmatpush2.xpose.msra.mxu0 0.0
      %1290 = vmatprep.subr.mxu0 0.0
      %1291 = vmatpush2.xpose.msra.mxu0 0.0
      %1292 = vmatprep.subr.mxu0 0.0
      %1293 = vmatpush2.xpose.msra.mxu0 0.0
      %1294 = vmatprep.subr.mxu0 0.0
      %1295 = vmatpush2.xpose.msra.mxu0 0.0
      %1296 = vmatprep.subr.mxu0 0.0
      %1297 = vmatpush2.xpose.msra.mxu0 0.0
      %1298 = vmatprep.subr.mxu0 0.0
      %1299 = vmatpush2.xpose.msra.mxu0 0.0
      %1300 = vmatprep.subr.mxu0 0.0
      %1301 = vmatpush2.xpose.msra.mxu0 0.0
      %1302 = vmatprep.subr.mxu0 0.0
      %1303 = vmatpush2.xpose.msra.mxu0 0.0
      %1304 = vmatprep.subr.mxu0 0.0
      %1305 = vmatpush2.xpose.msra.mxu0 0.0
      %1306 = vmatprep.subr.mxu0 0.0
      %1307 = vmatpush2.xpose.msra.mxu0 0.0
      %1308 = vmatprep.subr.mxu0 0.0
      %1309 = vmatpush2.xpose.msra.mxu0 0.0
      %1310 = vmatprep.subr.mxu0 0.0
      %1311 = vmatpush2.xpose.msra.mxu0 0.0
      %1312 = vmatprep.subr.mxu0 0.0
      %1313 = vmatpush2.xpose.msra.mxu0 0.0
      %1314 = vmatprep.subr.mxu0 0.0
      %1315 = vmatpush2.xpose.msra.mxu0 0.0
      %1316 = vmatprep.subr.mxu0 0.0
      %1317 = vmatpush2.xpose.msra.mxu0 0.0
      %1318 = vmatprep.mubr.f32.mxu0 0.0
      %1319 = vmatmul.mubr.f32.gmra.mxu0 %v1242
      %v1320 = vpop.f32.mrf.mxu0
      %v1321 = vadd.f32 0.0, %v1320
      %v1322 = vpop.f32.mrf.mxu0
      %1323 = vmatprep.mubr.f32.mxu0 0.0
      %1324 = vmatmul.mubr.f32.gmra.mxu0 %v1244
      %v1325 = vpop.f32.mrf.mxu0
      %v1326 = vadd.f32 0.0, %v1325
      %v1327 = vpop.f32.mrf.mxu0
      %1328 = vmatprep.mubr.f32.mxu0 0.0
      %1329 = vmatmul.mubr.f32.gmra.mxu0 %v1246
      %v1330 = vpop.f32.mrf.mxu0
      %v1331 = vadd.f32 0.0, %v1330
      %v1332 = vpop.f32.mrf.mxu0
      %1333 = vdwg.mxu0
      %v1334 = vmul.f32 %v1321, 0.25
      %v1335 = vmul.f32 %v1326, 0.25
      %v1336 = vmul.f32 %v1331, 0.25
      %v1337 = vadd.f32 %v1334, %v900
      %v1338 = vadd.f32 %v1335, %v901
      %v1339 = vadd.f32 %v1336, %v902
      %v1340 = vsel %vm1091, %v1337, -inf
      %1341 = vmax.xlane.f32.xlu0 %v1340
      %v1342 = vpop.xlane.xlu0 %1341
      %v1343 = vsel %vm1091, %v1338, -inf
      %1344 = vmax.xlane.f32.xlu0 %v1343
      %v1345 = vpop.xlane.xlu0 %1344
      %v1346 = vsel %vm1091, %v1339, -inf
      %1347 = vmax.xlane.f32.xlu0 %v1346
      %v1348 = vpop.xlane.xlu0 %1347
      %v1349 = vsub.f32 %v1337, %v1342
      %v1350 = vsub.f32 %v1338, %v1345
      %v1351 = vsub.f32 %v1339, %v1348
      %v1352 = vmul.f32 %v1349, 1.442695
      %v1353 = vpow.pop %v1352
      %v1354 = vmul.f32 %v1350, 1.442695
      %v1355 = vpow.pop %v1354
      %v1356 = vmul.f32 %v1351, 1.442695
      %v1357 = vpow.pop %v1356
      %v1358 = vsel %vm1091, %v1353, 0.0
      %1359 = vadd.xlane.f32.xlu0 %v1358
      %v1360 = vpop.xlane.xlu0 %1359
      %v1361 = vsel %vm1091, %v1355, 0.0
      %1362 = vadd.xlane.f32.xlu0 %v1361
      %v1363 = vpop.xlane.xlu0 %1362
      %v1364 = vsel %vm1091, %v1357, 0.0
      %1365 = vadd.xlane.f32.xlu0 %v1364
      %v1366 = vpop.xlane.xlu0 %1365
      %v1367 = vrcp.pop %v1360
      %v1368 = vrcp.pop %v1363
      %v1369 = vrcp.pop %v1366
      %v1370 = vmul.f32 %v1353, %v1367
      %v1371 = vmul.f32 %v1355, %v1368
      %v1372 = vmul.f32 %v1357, %v1369
      %s1373 = scalar_lea.vmem %s815, 24
      %1374 = vst.msk [vmem:[%s1373] sm:$0xff] %vm1091, %v1370
      %1375 = vst.msk [vmem:[%s1373 + $0x8] sm:$0xff] %vm1091, %v1371
      %1376 = vst.msk [vmem:[%s1373 + $0x10] sm:$0xff] %vm1091, %v1372
      %1377 = vrot.lane.b32.xlu0 %v970, 48
      %v1378 = vpop.permute.xlu0 %1377
      %1379 = vrot.lane.b32.xlu0 %v973, 48
      %v1380 = vpop.permute.xlu0 %1379
      %1381 = vrot.lane.b32.xlu0 %v978, 48
      %v1382 = vpop.permute.xlu0 %1381
      %v1387 = vsel %vm1091, %v1370, 0
      %v1390 = vsel %vm1091, %v1371, 0
      %v1393 = vsel %vm1091, %v1372, 0
      %1395 = vmatprep.subr.mxu0 0.0
      %1396 = vmatpush1.msra.mxu0 0.0
      %1397 = vmatprep.subr.mxu0 0.0
      %1398 = vmatpush1.msra.mxu0 0.0
      %1399 = vmatprep.subr.mxu0 0.0
      %1400 = vmatpush1.msra.mxu0 0.0
      %1401 = vmatprep.subr.mxu0 0.0
      %1402 = vmatpush1.msra.mxu0 0.0
      %1403 = vmatprep.subr.mxu0 0.0
      %1404 = vmatpush1.msra.mxu0 0.0
      %1405 = vmatprep.subr.mxu0 0.0
      %1406 = vmatpush1.msra.mxu0 0.0
      %1407 = vmatprep.subr.mxu0 0.0
      %1408 = vmatpush1.msra.mxu0 0.0
      %1409 = vmatprep.subr.mxu0 0.0
      %1410 = vmatpush1.msra.mxu0 0.0
      %1411 = vmatprep.subr.mxu0 0.0
      %1412 = vmatpush1.msra.mxu0 0.0
      %1413 = vmatprep.subr.mxu0 0.0
      %1414 = vmatpush1.msra.mxu0 0.0
      %1415 = vmatprep.subr.mxu0 0.0
      %1416 = vmatpush1.msra.mxu0 0.0
      %1417 = vmatprep.subr.mxu0 0.0
      %1418 = vmatpush1.msra.mxu0 0.0
      %1419 = vmatprep.subr.mxu0 0.0
      %1420 = vmatpush1.msra.mxu0 0.0
      %1421 = vmatprep.subr.mxu0 0.0
      %1422 = vmatpush1.msra.mxu0 %v1382
      %1423 = vmatprep.subr.mxu0 0.0
      %1424 = vmatpush1.msra.mxu0 %v1380
      %1425 = vmatprep.subr.mxu0 0.0
      %1426 = vmatpush1.msra.mxu0 %v1378
      %1427 = vmatprep.subr.mxu0 0.0
      %1428 = vmatpush2.msra.mxu0 0.0
      %1429 = vmatprep.subr.mxu0 0.0
      %1430 = vmatpush2.msra.mxu0 0.0
      %1431 = vmatprep.subr.mxu0 0.0
      %1432 = vmatpush2.msra.mxu0 0.0
      %1433 = vmatprep.subr.mxu0 0.0
      %1434 = vmatpush2.msra.mxu0 0.0
      %1435 = vmatprep.subr.mxu0 0.0
      %1436 = vmatpush2.msra.mxu0 0.0
      %1437 = vmatprep.subr.mxu0 0.0
      %1438 = vmatpush2.msra.mxu0 0.0
      %1439 = vmatprep.subr.mxu0 0.0
      %1440 = vmatpush2.msra.mxu0 0.0
      %1441 = vmatprep.subr.mxu0 0.0
      %1442 = vmatpush2.msra.mxu0 0.0
      %1443 = vmatprep.subr.mxu0 0.0
      %1444 = vmatpush2.msra.mxu0 0.0
      %1445 = vmatprep.subr.mxu0 0.0
      %1446 = vmatpush2.msra.mxu0 0.0
      %1447 = vmatprep.subr.mxu0 0.0
      %1448 = vmatpush2.msra.mxu0 0.0
      %1449 = vmatprep.subr.mxu0 0.0
      %1450 = vmatpush2.msra.mxu0 0.0
      %1451 = vmatprep.subr.mxu0 0.0
      %1452 = vmatpush2.msra.mxu0 0.0
      %1453 = vmatprep.subr.mxu0 0.0
      %1454 = vmatpush2.msra.mxu0 0.0
      %1455 = vmatprep.subr.mxu0 0.0
      %1456 = vmatpush2.msra.mxu0 0.0
      %1457 = vmatprep.subr.mxu0 0.0
      %1458 = vmatpush2.msra.mxu0 0.0
      %1459 = vmatprep.mubr.f32.mxu0 0.0
      %1460 = vmatmul.mubr.f32.gmra.mxu0 %v1387
      %v1461 = vpop.f32.mrf.mxu0
      %v1462 = vadd.f32 0.0, %v1461
      %v1463 = vpop.f32.mrf.mxu0
      %1464 = vmatprep.mubr.f32.mxu0 0.0
      %1465 = vmatmul.mubr.f32.gmra.mxu0 %v1390
      %v1466 = vpop.f32.mrf.mxu0
      %v1467 = vadd.f32 0.0, %v1466
      %v1468 = vpop.f32.mrf.mxu0
      %1469 = vmatprep.mubr.f32.mxu0 0.0
      %1470 = vmatmul.mubr.f32.gmra.mxu0 %v1393
      %v1471 = vpop.f32.mrf.mxu0
      %v1472 = vadd.f32 0.0, %v1471
      %v1473 = vpop.f32.mrf.mxu0
      %1474 = vdwg.mxu0
      %s1475 = scalar_lea.vmem %s770, 8
      %v1476 = vld [vmem:[%s1475] sm:$0xf]
      %v1477 = vld [vmem:[%s1475 + $0x4] sm:$0xf]
      %v1478 = vpack.c.bf16 %v1467, %v1462
      %v1479 = vpack.c.bf16 %v1472, %v1472
      %v1482 = vunpack.c.l.b16 %v1476
      %v1483 = vunpack.c.l.b16 %v1477
      %v1484 = vpack.c.b16 %v1483, %v1482
      %v1487 = vsel %vm992, %v1478, 0
      %v1490 = vsel %vm992, %v1479, 0
      %1492 = vmatprep.subr.bf16.mxu0 0
      %1493 = vmatpush1.bf16.msra.mxu0 0
      %1494 = vmatprep.subr.bf16.mxu0 0
      %1495 = vmatpush1.bf16.msra.mxu0 0
      %1496 = vmatprep.subr.bf16.mxu0 0
      %1497 = vmatpush1.bf16.msra.mxu0 0
      %1498 = vmatprep.subr.bf16.mxu0 0
      %1499 = vmatpush1.bf16.msra.mxu0 0
      %1500 = vmatprep.subr.bf16.mxu0 0
      %1501 = vmatpush1.bf16.msra.mxu0 0
      %1502 = vmatprep.subr.bf16.mxu0 0
      %1503 = vmatpush1.bf16.msra.mxu0 0
      %1504 = vmatprep.subr.bf16.mxu0 0
      %1505 = vmatpush1.bf16.msra.mxu0 0
      %1506 = vmatprep.subr.bf16.mxu0 0
      %1507 = vmatpush1.bf16.msra.mxu0 %v1484
      %1508 = vmatprep.subr.bf16.mxu0 0
      %1509 = vmatpush2.bf16.msra.mxu0 0
      %1510 = vmatprep.subr.bf16.mxu0 0
      %1511 = vmatpush2.bf16.msra.mxu0 0
      %1512 = vmatprep.subr.bf16.mxu0 0
      %1513 = vmatpush2.bf16.msra.mxu0 0
      %1514 = vmatprep.subr.bf16.mxu0 0
      %1515 = vmatpush2.bf16.msra.mxu0 0
      %1516 = vmatprep.subr.bf16.mxu0 0
      %1517 = vmatpush2.bf16.msra.mxu0 0
      %1518 = vmatprep.subr.bf16.mxu0 0
      %1519 = vmatpush2.bf16.msra.mxu0 0
      %1520 = vmatprep.subr.bf16.mxu0 0
      %1521 = vmatpush2.bf16.msra.mxu0 0
      %1522 = vmatprep.subr.bf16.mxu0 0
      %1523 = vmatpush2.bf16.msra.mxu0 0
      %1524 = vmatprep.mubr.bf16.mxu0 0
      %1525 = vmatmul.mubr.bf16.gmra.mxu0 %v1487
      %v1526 = vpop.f32.mrf.mxu0
      %v1527 = vadd.f32 0.0, %v1526
      %v1528 = vpop.f32.mrf.mxu0
      %v1529 = vpop.f32.mrf.mxu0
      %v1530 = vadd.f32 0.0, %v1529
      %v1531 = vpop.f32.mrf.mxu0
      %1532 = vmatprep.mubr.bf16.mxu0 0
      %1533 = vmatmul.mubr.bf16.gmra.mxu0 %v1490
      %v1534 = vpop.f32.mrf.mxu0
      %v1535 = vadd.f32 0.0, %v1534
      %v1536 = vpop.f32.mrf.mxu0
      %v1537 = vpop.f32.mrf.mxu0
      %v1538 = vpop.f32.mrf.mxu0
      %1539 = vdwg.mxu0
      %v1542 = vunpack.c.l.b16 %v1226
      %v1543 = vunpack.c.l.b16 %v1227
      %v1544 = vpack.c.b16 %v1543, %v1542
      %v1547 = vsel %vm992, %v1228, 0
      %v1550 = vsel %vm992, %v1229, 0
      %1552 = vmatprep.subr.bf16.mxu0 0
      %1553 = vmatpush1.bf16.msra.mxu0 0
      %1554 = vmatprep.subr.bf16.mxu0 0
      %1555 = vmatpush1.bf16.msra.mxu0 0
      %1556 = vmatprep.subr.bf16.mxu0 0
      %1557 = vmatpush1.bf16.msra.mxu0 0
      %1558 = vmatprep.subr.bf16.mxu0 0
      %1559 = vmatpush1.bf16.msra.mxu0 0
      %1560 = vmatprep.subr.bf16.mxu0 0
      %1561 = vmatpush1.bf16.msra.mxu0 0
      %1562 = vmatprep.subr.bf16.mxu0 0
      %1563 = vmatpush1.bf16.msra.mxu0 0
      %1564 = vmatprep.subr.bf16.mxu0 0
      %1565 = vmatpush1.bf16.msra.mxu0 0
      %1566 = vmatprep.subr.bf16.mxu0 0
      %1567 = vmatpush1.bf16.msra.mxu0 %v1544
      %1568 = vmatprep.subr.bf16.mxu0 0
      %1569 = vmatpush2.bf16.msra.mxu0 0
      %1570 = vmatprep.subr.bf16.mxu0 0
      %1571 = vmatpush2.bf16.msra.mxu0 0
      %1572 = vmatprep.subr.bf16.mxu0 0
      %1573 = vmatpush2.bf16.msra.mxu0 0
      %1574 = vmatprep.subr.bf16.mxu0 0
      %1575 = vmatpush2.bf16.msra.mxu0 0
      %1576 = vmatprep.subr.bf16.mxu0 0
      %1577 = vmatpush2.bf16.msra.mxu0 0
      %1578 = vmatprep.subr.bf16.mxu0 0
      %1579 = vmatpush2.bf16.msra.mxu0 0
      %1580 = vmatprep.subr.bf16.mxu0 0
      %1581 = vmatpush2.bf16.msra.mxu0 0
      %1582 = vmatprep.subr.bf16.mxu0 0
      %1583 = vmatpush2.bf16.msra.mxu0 0
      %1584 = vmatprep.mubr.bf16.mxu0 0
      %1585 = vmatmul.mubr.bf16.gmra.mxu0 %v1547
      %v1586 = vpop.f32.mrf.mxu0
      %v1587 = vadd.f32 %v1527, %v1586
      %v1588 = vpop.f32.mrf.mxu0
      %v1589 = vpop.f32.mrf.mxu0
      %v1590 = vadd.f32 %v1530, %v1589
      %v1591 = vpop.f32.mrf.mxu0
      %1592 = vmatprep.mubr.bf16.mxu0 0
      %1593 = vmatmul.mubr.bf16.gmra.mxu0 %v1550
      %v1594 = vpop.f32.mrf.mxu0
      %v1595 = vadd.f32 %v1535, %v1594
      %v1596 = vpop.f32.mrf.mxu0
      %v1597 = vpop.f32.mrf.mxu0
      %v1598 = vpop.f32.mrf.mxu0
      %1599 = vdwg.mxu0
      %v1600 = vadd.f32 %v897, %v1587
      %v1601 = vadd.f32 %v898, %v1590
      %v1602 = vadd.f32 %v899, %v1595
      %v1603 = vld [vmem:[%s773] sm:$0x1]
      %v1605 = vlaneseq
      %v1606 = vshrl.u32 %v1605, 7
      %v1607 = vsub.s32 0, %v1606
      %v1608 = vrot.slane %v1603, %v1607
      %v1610 = vadd.f32 %v1600, %v1608
      %v1611 = vadd.f32 %v1601, %v1608
      %v1612 = vadd.f32 %v1602, %v1608
      %v1613 = vld [vmem:[%s792] sm:$0x1]
      %v1614 = vld [vmem:[%s795] sm:$0x1]
      %v1615 = vsel %vm928, %v1610, 0.0
      %1616 = vadd.xlane.f32.xlu0 %v1615
      %v1617 = vpop.xlane.xlu0 %1616
      %v1618 = vsel %vm928, %v1611, 0.0
      %1619 = vadd.xlane.f32.xlu0 %v1618
      %v1620 = vpop.xlane.xlu0 %1619
      %v1621 = vsel %vm928, %v1612, 0.0
      %1622 = vadd.xlane.f32.xlu0 %v1621
      %v1623 = vpop.xlane.xlu0 %1622
      %v1624 = vrcp.pop 32.0
      %v1625 = vmul.f32 %v1617, %v1624
      %v1626 = vmul.f32 %v1620, %v1624
      %v1627 = vmul.f32 %v1623, %v1624
      %v1628 = vsub.f32 %v1610, %v1625
      %v1629 = vsub.f32 %v1611, %v1626
      %v1630 = vsub.f32 %v1612, %v1627
      %v1631 = vmul.f32 %v1628, %v1628
      %v1632 = vmul.f32 %v1629, %v1629
      %v1633 = vmul.f32 %v1630, %v1630
      %v1634 = vsel %vm928, %v1631, 0.0
      %1635 = vadd.xlane.f32.xlu0 %v1634
      %v1636 = vpop.xlane.xlu0 %1635
      %v1637 = vsel %vm928, %v1632, 0.0
      %1638 = vadd.xlane.f32.xlu0 %v1637
      %v1639 = vpop.xlane.xlu0 %1638
      %v1640 = vsel %vm928, %v1633, 0.0
      %1641 = vadd.xlane.f32.xlu0 %v1640
      %v1642 = vpop.xlane.xlu0 %1641
      %v1643 = vmul.f32 %v1636, %v1624
      %v1644 = vmul.f32 %v1639, %v1624
      %v1645 = vmul.f32 %v1642, %v1624
      %v1646 = vadd.f32 %v1643, 1e-05
      %v1647 = vadd.f32 %v1644, 1e-05
      %v1648 = vadd.f32 %v1645, 1e-05
      %v1649 = vrsqrt.pop %v1646
      %v1650 = vrsqrt.pop %v1647
      %v1651 = vrsqrt.pop %v1648
      %v1652 = vmul.f32 %v1628, %v1649
      %v1653 = vmul.f32 %v1629, %v1650
      %v1654 = vmul.f32 %v1630, %v1651
      %v1656 = vlaneseq
      %v1657 = vshrl.u32 %v1656, 7
      %v1658 = vsub.s32 0, %v1657
      %v1659 = vrot.slane %v1613, %v1658
      %v1661 = vmul.f32 %v1652, %v1659
      %v1662 = vmul.f32 %v1653, %v1659
      %v1663 = vmul.f32 %v1654, %v1659
      %v1665 = vlaneseq
      %v1666 = vshrl.u32 %v1665, 7
      %v1667 = vsub.s32 0, %v1666
      %v1668 = vrot.slane %v1614, %v1667
      %v1670 = vadd.f32 %v1661, %v1668
      %v1671 = vadd.f32 %v1662, %v1668
      %v1672 = vadd.f32 %v1663, %v1668
      %v1673 = vld [vmem:[%s778] sm:$0xf]
      %v1674 = vld [vmem:[%s778 + $0x4] sm:$0xf]
      %v1675 = vld [vmem:[%s778 + $0x8] sm:$0xf]
      %v1676 = vld [vmem:[%s778 + $0xc] sm:$0xf]
      %v1677 = vpack.c.bf16 %v1671, %v1670
      %v1678 = vpack.c.bf16 %v1672, %v1672
      %v1679 = vld [vmem:[%s781] sm:$0x1]
      %v1681 = vlaneseq
      %v1682 = vshrl.u32 %v1681, 7
      %v1683 = vsub.s32 0, %v1682
      %v1684 = vrot.slane %v1679, %v1683
      %v1690 = vunpack.c.l.b16 %v1673
      %v1691 = vunpack.c.l.b16 %v1674
      %v1692 = vunpack.c.l.b16 %v1675
      %v1693 = vunpack.c.l.b16 %v1676
      %v1694 = vpack.c.b16 %v1691, %v1690
      %v1695 = vpack.c.b16 %v1693, %v1692
      %v1699 = vsel %vm928, %v1677, 0
      %v1702 = vsel %vm928, %v1678, 0
      %1704 = vmatprep.subr.bf16.mxu0 0
      %1705 = vmatpush1.bf16.msra.mxu0 0
      %1706 = vmatprep.subr.bf16.mxu0 0
      %1707 = vmatpush1.bf16.msra.mxu0 0
      %1708 = vmatprep.subr.bf16.mxu0 0
      %1709 = vmatpush1.bf16.msra.mxu0 0
      %1710 = vmatprep.subr.bf16.mxu0 0
      %1711 = vmatpush1.bf16.msra.mxu0 0
      %1712 = vmatprep.subr.bf16.mxu0 0
      %1713 = vmatpush1.bf16.msra.mxu0 0
      %1714 = vmatprep.subr.bf16.mxu0 0
      %1715 = vmatpush1.bf16.msra.mxu0 0
      %1716 = vmatprep.subr.bf16.mxu0 0
      %1717 = vmatpush1.bf16.msra.mxu0 %v1695
      %1718 = vmatprep.subr.bf16.mxu0 0
      %1719 = vmatpush1.bf16.msra.mxu0 %v1694
      %1720 = vmatprep.subr.bf16.mxu0 0
      %1721 = vmatpush2.bf16.msra.mxu0 0
      %1722 = vmatprep.subr.bf16.mxu0 0
      %1723 = vmatpush2.bf16.msra.mxu0 0
      %1724 = vmatprep.subr.bf16.mxu0 0
      %1725 = vmatpush2.bf16.msra.mxu0 0
      %1726 = vmatprep.subr.bf16.mxu0 0
      %1727 = vmatpush2.bf16.msra.mxu0 0
      %1728 = vmatprep.subr.bf16.mxu0 0
      %1729 = vmatpush2.bf16.msra.mxu0 0
      %1730 = vmatprep.subr.bf16.mxu0 0
      %1731 = vmatpush2.bf16.msra.mxu0 0
      %1732 = vmatprep.subr.bf16.mxu0 0
      %1733 = vmatpush2.bf16.msra.mxu0 0
      %1734 = vmatprep.subr.bf16.mxu0 0
      %1735 = vmatpush2.bf16.msra.mxu0 0
      %1736 = vmatprep.mubr.bf16.mxu0 0
      %1737 = vmatmul.mubr.bf16.gmra.mxu0 %v1699
      %v1738 = vpop.f32.mrf.mxu0
      %v1739 = vadd.f32 %v1684, %v1738
      %v1740 = vpop.f32.mrf.mxu0
      %v1741 = vpop.f32.mrf.mxu0
      %v1742 = vadd.f32 %v1684, %v1741
      %v1743 = vpop.f32.mrf.mxu0
      %1744 = vmatprep.mubr.bf16.mxu0 0
      %1745 = vmatmul.mubr.bf16.gmra.mxu0 %v1702
      %v1746 = vpop.f32.mrf.mxu0
      %v1747 = vadd.f32 %v1684, %v1746
      %v1748 = vpop.f32.mrf.mxu0
      %v1749 = vpop.f32.mrf.mxu0
      %v1750 = vpop.f32.mrf.mxu0
      %1751 = vdwg.mxu0
      %v1752 = vmul.f32 %v1739, 0.5
      %v1753 = vmul.f32 %v1742, 0.5
      %v1754 = vmul.f32 %v1747, 0.5
      %v1755 = vmul.f32 %v1739, 0.70710677
      %v1756 = vmul.f32 %v1742, 0.70710677
      %v1757 = vmul.f32 %v1747, 0.70710677
      %v1758 = verf.f32.pop %v1755
      %v1759 = verf.f32.pop %v1756
      %v1760 = verf.f32.pop %v1757
      %v1761 = vadd.f32 %v1758, 1.0
      %v1762 = vadd.f32 %v1759, 1.0
      %v1763 = vadd.f32 %v1760, 1.0
      %v1764 = vmul.f32 %v1752, %v1761
      %v1765 = vmul.f32 %v1753, %v1762
      %v1766 = vmul.f32 %v1754, %v1763
      %1767 = vst [vmem:[%s824] sm:$0xff] %v1764
      %1768 = vst [vmem:[%s824 + $0x8] sm:$0xff] %v1765
      %1769 = vst [vmem:[%s824 + $0x10] sm:$0xff] %v1766
      %v1770 = vld [vmem:[%s786] sm:$0xf]
      %v1771 = vld [vmem:[%s786 + $0x4] sm:$0xf]
      %v1772 = vld [vmem:[%s786 + $0x8] sm:$0xf]
      %v1773 = vld [vmem:[%s786 + $0xc] sm:$0xf]
      %v1774 = vld [vmem:[%s786 + $0x10] sm:$0xf]
      %v1775 = vld [vmem:[%s786 + $0x14] sm:$0xf]
      %v1776 = vld [vmem:[%s786 + $0x18] sm:$0xf]
      %v1777 = vld [vmem:[%s786 + $0x1c] sm:$0xf]
      %v1778 = vld [vmem:[%s786 + $0x20] sm:$0xf]
      %v1779 = vld [vmem:[%s786 + $0x24] sm:$0xf]
      %v1780 = vld [vmem:[%s786 + $0x28] sm:$0xf]
      %v1781 = vld [vmem:[%s786 + $0x2c] sm:$0xf]
      %v1782 = vld [vmem:[%s786 + $0x30] sm:$0xf]
      %v1783 = vld [vmem:[%s786 + $0x34] sm:$0xf]
      %v1784 = vld [vmem:[%s786 + $0x38] sm:$0xf]
      %v1785 = vld [vmem:[%s786 + $0x3c] sm:$0xf]
      %v1786 = vpack.c.bf16 %v1765, %v1764
      %v1787 = vpack.c.bf16 %v1766, %v1766
      %v1804 = vunpack.c.l.b16 %v1770
      %v1805 = vunpack.c.l.b16 %v1771
      %v1806 = vunpack.c.l.b16 %v1772
      %v1807 = vunpack.c.l.b16 %v1773
      %v1808 = vunpack.c.l.b16 %v1774
      %v1809 = vunpack.c.l.b16 %v1775
      %v1810 = vunpack.c.l.b16 %v1776
      %v1811 = vunpack.c.l.b16 %v1777
      %v1812 = vunpack.c.l.b16 %v1778
      %v1813 = vunpack.c.l.b16 %v1779
      %v1814 = vunpack.c.l.b16 %v1780
      %v1815 = vunpack.c.l.b16 %v1781
      %v1816 = vunpack.c.l.b16 %v1782
      %v1817 = vunpack.c.l.b16 %v1783
      %v1818 = vunpack.c.l.b16 %v1784
      %v1819 = vunpack.c.l.b16 %v1785
      %v1820 = vpack.c.b16 %v1805, %v1804
      %v1821 = vpack.c.b16 %v1807, %v1806
      %v1822 = vpack.c.b16 %v1809, %v1808
      %v1823 = vpack.c.b16 %v1811, %v1810
      %v1824 = vpack.c.b16 %v1813, %v1812
      %v1825 = vpack.c.b16 %v1815, %v1814
      %v1826 = vpack.c.b16 %v1817, %v1816
      %v1827 = vpack.c.b16 %v1819, %v1818
      %1836 = vmatprep.subr.bf16.mxu0 0
      %1837 = vmatpush1.bf16.msra.mxu0 %v1827
      %1838 = vmatprep.subr.bf16.mxu0 0
      %1839 = vmatpush1.bf16.msra.mxu0 %v1826
      %1840 = vmatprep.subr.bf16.mxu0 0
      %1841 = vmatpush1.bf16.msra.mxu0 %v1825
      %1842 = vmatprep.subr.bf16.mxu0 0
      %1843 = vmatpush1.bf16.msra.mxu0 %v1824
      %1844 = vmatprep.subr.bf16.mxu0 0
      %1845 = vmatpush1.bf16.msra.mxu0 %v1823
      %1846 = vmatprep.subr.bf16.mxu0 0
      %1847 = vmatpush1.bf16.msra.mxu0 %v1822
      %1848 = vmatprep.subr.bf16.mxu0 0
      %1849 = vmatpush1.bf16.msra.mxu0 %v1821
      %1850 = vmatprep.subr.bf16.mxu0 0
      %1851 = vmatpush1.bf16.msra.mxu0 %v1820
      %1852 = vmatprep.subr.bf16.mxu0 0
      %1853 = vmatpush2.bf16.msra.mxu0 0
      %1854 = vmatprep.subr.bf16.mxu0 0
      %1855 = vmatpush2.bf16.msra.mxu0 0
      %1856 = vmatprep.subr.bf16.mxu0 0
      %1857 = vmatpush2.bf16.msra.mxu0 0
      %1858 = vmatprep.subr.bf16.mxu0 0
      %1859 = vmatpush2.bf16.msra.mxu0 0
      %1860 = vmatprep.subr.bf16.mxu0 0
      %1861 = vmatpush2.bf16.msra.mxu0 0
      %1862 = vmatprep.subr.bf16.mxu0 0
      %1863 = vmatpush2.bf16.msra.mxu0 0
      %1864 = vmatprep.subr.bf16.mxu0 0
      %1865 = vmatpush2.bf16.msra.mxu0 0
      %1866 = vmatprep.subr.bf16.mxu0 0
      %1867 = vmatpush2.bf16.msra.mxu0 0
      %1868 = vmatprep.mubr.bf16.mxu0 0
      %1869 = vmatmul.mubr.bf16.gmra.mxu0 %v1786
      %v1870 = vpop.f32.mrf.mxu0
      %v1871 = vadd.f32 0.0, %v1870
      %v1872 = vpop.f32.mrf.mxu0
      %v1873 = vpop.f32.mrf.mxu0
      %v1874 = vadd.f32 0.0, %v1873
      %v1875 = vpop.f32.mrf.mxu0
      %1876 = vmatprep.mubr.bf16.mxu0 0
      %1877 = vmatmul.mubr.bf16.gmra.mxu0 %v1787
      %v1878 = vpop.f32.mrf.mxu0
      %v1879 = vadd.f32 0.0, %v1878
      %v1880 = vpop.f32.mrf.mxu0
      %v1881 = vpop.f32.mrf.mxu0
      %v1882 = vpop.f32.mrf.mxu0
      %1883 = vdwg.mxu0
      %v1884 = vadd.f32 %v1670, %v1871
      %v1885 = vadd.f32 %v1671, %v1874
      %v1886 = vadd.f32 %v1672, %v1879
      %v1887 = vld [vmem:[%s789] sm:$0x1]
      %v1889 = vlaneseq
      %v1890 = vshrl.u32 %v1889, 7
      %v1891 = vsub.s32 0, %v1890
      %v1892 = vrot.slane %v1887, %v1891
      %v1894 = vadd.f32 %v1884, %v1892
      %v1895 = vadd.f32 %v1885, %v1892
      %v1896 = vadd.f32 %v1886, %v1892
      %v1897 = vld [vmem:[%s798] sm:$0x1]
      %v1898 = vld [vmem:[%s801] sm:$0x1]
      %v1899 = vsel %vm928, %v1894, 0.0
      %1900 = vadd.xlane.f32.xlu0 %v1899
      %v1901 = vpop.xlane.xlu0 %1900
      %v1902 = vsel %vm928, %v1895, 0.0
      %1903 = vadd.xlane.f32.xlu0 %v1902
      %v1904 = vpop.xlane.xlu0 %1903
      %v1905 = vsel %vm928, %v1896, 0.0
      %1906 = vadd.xlane.f32.xlu0 %v1905
      %v1907 = vpop.xlane.xlu0 %1906
      %v1908 = vmul.f32 %v1901, %v1624
      %v1909 = vmul.f32 %v1904, %v1624
      %v1910 = vmul.f32 %v1907, %v1624
      %v1911 = vsub.f32 %v1894, %v1908
      %v1912 = vsub.f32 %v1895, %v1909
      %v1913 = vsub.f32 %v1896, %v1910
      %v1914 = vmul.f32 %v1911, %v1911
      %v1915 = vmul.f32 %v1912, %v1912
      %v1916 = vmul.f32 %v1913, %v1913
      %v1917 = vsel %vm928, %v1914, 0.0
      %1918 = vadd.xlane.f32.xlu0 %v1917
      %v1919 = vpop.xlane.xlu0 %1918
      %v1920 = vsel %vm928, %v1915, 0.0
      %1921 = vadd.xlane.f32.xlu0 %v1920
      %v1922 = vpop.xlane.xlu0 %1921
      %v1923 = vsel %vm928, %v1916, 0.0
      %1924 = vadd.xlane.f32.xlu0 %v1923
      %v1925 = vpop.xlane.xlu0 %1924
      %v1926 = vmul.f32 %v1919, %v1624
      %v1927 = vmul.f32 %v1922, %v1624
      %v1928 = vmul.f32 %v1925, %v1624
      %v1929 = vadd.f32 %v1926, 1e-05
      %v1930 = vadd.f32 %v1927, 1e-05
      %v1931 = vadd.f32 %v1928, 1e-05
      %v1932 = vrsqrt.pop %v1929
      %v1933 = vrsqrt.pop %v1930
      %v1934 = vrsqrt.pop %v1931
      %v1935 = vmul.f32 %v1911, %v1932
      %v1936 = vmul.f32 %v1912, %v1933
      %v1937 = vmul.f32 %v1913, %v1934
      %v1939 = vlaneseq
      %v1940 = vshrl.u32 %v1939, 7
      %v1941 = vsub.s32 0, %v1940
      %v1942 = vrot.slane %v1897, %v1941
      %v1944 = vmul.f32 %v1935, %v1942
      %v1945 = vmul.f32 %v1936, %v1942
      %v1946 = vmul.f32 %v1937, %v1942
      %v1948 = vlaneseq
      %v1949 = vshrl.u32 %v1948, 7
      %v1950 = vsub.s32 0, %v1949
      %v1951 = vrot.slane %v1898, %v1950
      %v1953 = vadd.f32 %v1944, %v1951
      %v1954 = vadd.f32 %v1945, %v1951
      %v1955 = vadd.f32 %v1946, %v1951
      %1956 = vst.msk [vmem:[#allocation2] sm:$0xff] %vm928, %v1953
      %1957 = vst.msk [vmem:[#allocation2 + $0x8] sm:$0xff] %vm928, %v1954
      %1958 = vst.msk [vmem:[#allocation2 + $0x10] sm:$0xff] %vm928, %v1955
      %1959 = vst.msk [vmem:[%s806] sm:$0xff] %vm928, %v1953
      %1960 = vst.msk [vmem:[%s806 + $0x8] sm:$0xff] %vm928, %v1954
      %1961 = vst.msk [vmem:[%s806 + $0x10] sm:$0xff] %vm928, %v1955
      %p1962 = scmp.lt.s32.totalorder %s34, 1
      %s1963 = scalar_select %p1962, %s34, 1
      %s1964 = smul.addr %s1963, 3
      %s1965 = smul.addr %s1964, 8
      %s1966 = scalar_lea.vmem %s16, %s1965
      %p1967 = scmp.lt.s32.totalorder %s35, 1
      %s1968 = scalar_select %p1967, %s35, 1
      %p1969 = scmp.lt.s32.totalorder %s34, 1
      %s1970 = scalar_select %p1969, %s34, 1
      %s1971 = smul.addr %s1970, 6
      %s1972 = smul.addr %s1968, 12
      %s1973 = sadd.s32 %s1971, %s1972
      %s1974 = smul.addr %s1973, 8
      %s1975 = scalar_lea.vmem %s17, %s1974
      %p1976 = scmp.lt.s32.totalorder %s35, 1
      %s1977 = scalar_select %p1976, %s35, 1
      %p1978 = scmp.lt.s32.totalorder %s34, 1
      %s1979 = scalar_select %p1978, %s34, 1
      %s1980 = smul.addr %s1979, 3
      %s1981 = smul.addr %s1977, 6
      %s1982 = sadd.s32 %s1980, %s1981
      %s1983 = smul.addr %s1982, 8
      %s1984 = scalar_lea.vmem %s18, %s1983
      // Predicated region
      $region89: #{decision_transformer_forward.2} parent=83 // pred_check
        %p1985 = pneg %p461
      $region90: #{decision_transformer_forward.2} parent=83 // pred_check_branch
        %1987 = sbr.rel (%p1985) target = $region92
      $region91: #{decision_transformer_forward.2} parent=83 // pred_region
        _
      $region92: #{decision_transformer_forward.2} parent=83 // pred_fallthru
        _
      // Predicated region
      $region93: #{decision_transformer_forward.2} parent=83 // pred_check
        %p1988 = pneg %p489
      $region94: #{decision_transformer_forward.2} parent=83 // pred_check_branch
        %1990 = sbr.rel (%p1988) target = $region96
      $region95: #{decision_transformer_forward.2} parent=83 // pred_region
        _
      $region96: #{decision_transformer_forward.2} parent=83 // pred_fallthru
        _
      // Predicated region
      $region97: #{decision_transformer_forward.2} parent=83 // pred_check
        %p1991 = pneg %p517
      $region98: #{decision_transformer_forward.2} parent=83 // pred_check_branch
        %1993 = sbr.rel (%p1991) target = $region100
      $region99: #{decision_transformer_forward.2} parent=83 // pred_region
        _
      $region100: #{decision_transformer_forward.2} parent=83 // pred_fallthru
        _
    $region84: #{decision_transformer_forward.2} parent=5 // pred_fallthru
      _
    %p1994 = scmp.le.s32.totalorder 2, %s25
    // Predicated region
    $region101: #{decision_transformer_forward.2} parent=5 // pred_check
      %p1995 = pneg %p1994
    $region102: #{decision_transformer_forward.2} parent=5 // pred_check_branch
      %1997 = sbr.rel (%p1995) target = $region104
    $region103: #{decision_transformer_forward.2} parent=5 // pred_region
      %s1998 = ssub.s32 %s25, 2
      // Predicated region
      $region105: #{decision_transformer_forward.2} parent=103 // pred_check
        %p1999 = pneg %p467
      $region106: #{decision_transformer_forward.2} parent=103 // pred_check_branch
        %2001 = sbr.rel (%p1999) target = $region108
      $region107: #{decision_transformer_forward.2} parent=103 // pred_region
        %p2002 = scmp.lt.s32.totalorder %s36, 1
        %s2003 = scalar_select %p2002, %s36, 1
        %s2004 = smul.addr %s2003, 3
        %s2005 = smul.addr %s2004, 8
        %s2006 = scalar_lea.vmem %s16, %s2005
      $region108: #{decision_transformer_forward.2} parent=103 // pred_fallthru
        _
      // Predicated region
      $region109: #{decision_transformer_forward.2} parent=103 // pred_check
        %p2007 = pneg %p495
      $region110: #{decision_transformer_forward.2} parent=103 // pred_check_branch
        %2009 = sbr.rel (%p2007) target = $region112
      $region111: #{decision_transformer_forward.2} parent=103 // pred_region
        %p2010 = scmp.lt.s32.totalorder %s37, 1
        %s2011 = scalar_select %p2010, %s37, 1
        %p2012 = scmp.lt.s32.totalorder %s36, 1
        %s2013 = scalar_select %p2012, %s36, 1
        %s2014 = smul.addr %s2013, 6
        %s2015 = smul.addr %s2011, 12
        %s2016 = sadd.s32 %s2014, %s2015
        %s2017 = smul.addr %s2016, 8
        %s2018 = scalar_lea.vmem %s17, %s2017
      $region112: #{decision_transformer_forward.2} parent=103 // pred_fallthru
        _
      // Predicated region
      $region113: #{decision_transformer_forward.2} parent=103 // pred_check
        %p2019 = pneg %p523
      $region114: #{decision_transformer_forward.2} parent=103 // pred_check_branch
        %2021 = sbr.rel (%p2019) target = $region116
      $region115: #{decision_transformer_forward.2} parent=103 // pred_region
        %p2022 = scmp.lt.s32.totalorder %s37, 1
        %s2023 = scalar_select %p2022, %s37, 1
        %p2024 = scmp.lt.s32.totalorder %s36, 1
        %s2025 = scalar_select %p2024, %s36, 1
        %s2026 = smul.addr %s2025, 3
        %s2027 = smul.addr %s2023, 6
        %s2028 = sadd.s32 %s2026, %s2027
        %s2029 = smul.addr %s2028, 8
        %s2030 = scalar_lea.vmem %s18, %s2029
      $region116: #{decision_transformer_forward.2} parent=103 // pred_fallthru
        _
    $region104: #{decision_transformer_forward.2} parent=5 // pred_fallthru
      _
  $region6: #{decision_transformer_forward.2} parent=0 // loop_footer
    %s29 = sadd.s32 1, %s25
  $region7: #{decision_transformer_forward.2} parent=0 // loop_footer_branch
    %24 = sbr.rel target = $region3
  $region8: #{decision_transformer_forward.2} parent=0 // loop_exit
    _

</llo_original>
